<compile_context>
chip_gen: v7x
topology: tpu7x:2x2x1
jax: 0.10.0
libtpu: 0.0.40
codegen_flags: <defaults>
</compile_context>

<pallas_src>
from collections import namedtuple

import jax
import jax.numpy as jnp
from jax import lax
from jax.experimental import pallas as pl
from jax.experimental.pallas import tpu as pltpu

# ---------------- genotype / constants (deterministic, in-script) ------------
Genotype = namedtuple("Genotype", ["recurrent", "concat"])
GENOTYPE = Genotype(
    recurrent=[("sigmoid", 0), ("relu", 1), ("relu", 1), ("identity", 1),
               ("tanh", 2), ("sigmoid", 5), ("tanh", 3), ("relu", 5)],
    concat=list(range(1, 9)),
)
STEPS = len(GENOTYPE.recurrent)

INITRANGE = 0.04
VOCAB = 50
PAD_IDX = 0
EMB = 32          # embedding_size == hidden_size == hidden_size_last (asserted)
HID = 32
NUM_LABELS = 4    # nn.Linear(hidden_size, 4)


# Group DAG nodes by predecessor state (static, derived from the genotype).
# Processing groups in increasing-pred order is always valid: when the group
# reading states[p] runs, every node with pred < p has already been produced.
# Within a group, nodes are ordered so same-activation nodes are contiguous
# ("runs"), letting the kernel apply one wide activation per run.
def _make_groups():
    by_pred = {}
    for i, (_name, pred) in enumerate(GENOTYPE.recurrent):
        by_pred.setdefault(pred, []).append(i)
    groups = []
    for pred in sorted(by_pred):
        nodes = sorted(by_pred[pred], key=lambda n: GENOTYPE.recurrent[n][0])
        runs = []
        for n in nodes:
            act = GENOTYPE.recurrent[n][0]
            if runs and runs[-1][0] == act:
                runs[-1] = (act, runs[-1][1] + 1)
            else:
                runs.append((act, 1))
        groups.append((pred, tuple(nodes), tuple(runs)))
    return tuple(groups)


GROUPS = _make_groups()


def _sigmoid(x):
    # sigmoid as one EUP tanh plus free VPU scale/shift (perf-review micro-opt).
    return 0.5 * jnp.tanh(0.5 * x) + 0.5


def _act(name, x):
    if name == "tanh":
        return jnp.tanh(x)
    if name == "relu":
        return jnp.maximum(x, 0.0)
    if name == "sigmoid":
        return _sigmoid(x)
    if name == "identity":
        return x
    raise NotImplementedError(name)


# ------------------------------- Pallas kernel --------------------------------
def darts_rnn_kernel(ids_ref, h0_ref, tbl_ref, w0h_ref, ws_ref, wlin_ref,
                     blin_ref, ahat_ref, probs_ref, xw_ref):
    TB = ids_ref.shape[0]
    B, H = h0_ref.shape
    T = TB // B
    VP = tbl_ref.shape[0]

    # ---- embedding + input projection, fused & off the serial chain ---------
    # xw[t*B + b, :] = emb[ids[t, b]] @ W0[:E]  via a single one-hot matmul.
    ids = ids_ref[...]                                           # (T*B, 1) int32
    iota = lax.broadcasted_iota(jnp.int32, (TB, VP), 1)
    onehot = (ids == iota).astype(jnp.float32).astype(jnp.bfloat16)
    xw_ref[...] = jnp.dot(onehot, tbl_ref[...],
                          preferred_element_type=jnp.float32)    # (T*B, 2H) f32

    def step(t, h_prev):
        # _compute_init_state: x @ W0[:E] is precomputed in xw_ref, so only
        # h_prev @ W0[E:] stays on the per-timestep critical path.
        xw = xw_ref[pl.ds(t * B, B), :]                          # (B, 2H)
        ch0 = xw + jnp.dot(h_prev.astype(jnp.bfloat16), w0h_ref[...],
                           preferred_element_type=jnp.float32)
        c0 = _sigmoid(ch0[:, :H])
        h0 = jnp.tanh(ch0[:, H:])
        s0 = h_prev + c0 * (h0 - h_prev)

        # DARTS cell DAG (genotype static -> fully unrolled at trace time).
        # Nodes sharing a predecessor are ONE lane-dense matmul against that
        # group's column block of the fused slab, laid out as
        # [c cols | h cols grouped by activation]: one wide sigmoid per group
        # and one wide activation per run; per-node work is VPU-only.
        states = [None] * (STEPS + 1)
        states[0] = s0
        col = 0
        for pred, nodes, runs in GROUPS:
            g = len(nodes)
            sp = states[pred]
            ch = jnp.dot(sp.astype(jnp.bfloat16),
                         ws_ref[:, col:col + 2 * g * H],
                         preferred_element_type=jnp.float32)
            c_slab = _sigmoid(ch[:, :g * H])
            k = 0
            for act, cnt in runs:
                h_blk = _act(act, ch[:, (g + k) * H:(g + k + cnt) * H])
                for j in range(cnt):
                    node = nodes[k + j]
                    c = c_slab[:, (k + j) * H:(k + j + 1) * H]
                    h = h_blk[:, j * H:(j + 1) * H]
                    states[node + 1] = sp + c * (h - sp)
                k += cnt
            col += 2 * g * H

        out = states[GENOTYPE.concat[0]]
        for idx in GENOTYPE.concat[1:]:
            out = out + states[idx]
        return out * (1.0 / float(len(GENOTYPE.concat)))

    # Fully unroll only while the instruction stream stays small.
    h_last = lax.fori_loop(0, T, step, h0_ref[...],
                           unroll=True if T <= 32 else 4)

    # Classifier head + softmax(dim=1), run once.
    a = (jnp.dot(h_last.astype(jnp.bfloat16), wlin_ref[...],
                 preferred_element_type=jnp.float32) + blin_ref[...])
    ahat_ref[...] = a
    a_max = jnp.max(a, axis=1, keepdims=True)
    e = jnp.exp(a - a_max)
    # approx reciprocal (EUP): probs may not sum to exactly 1.
    probs_ref[...] = e * pl.reciprocal(jnp.sum(e, axis=1, keepdims=True),
                                       approx=True)


# ------------------------- deterministic parameter init ------------------------
def init_params(key):
    """Canonical f32 parameters (mirrors the torch module's init)."""
    ks = jax.random.split(key, 5)
    emb = jax.random.uniform(ks[0], (VOCAB, EMB), jnp.float32, -INITRANGE, INITRANGE)
    emb = emb.at[PAD_IDX].set(0.0)  # padding_idx row
    W0 = jax.random.uniform(ks[1], (EMB + HID, 2 * HID), jnp.float32, -INITRANGE, INITRANGE)
    Ws = jax.random.uniform(ks[2], (STEPS, HID, 2 * HID), jnp.float32, -INITRANGE, INITRANGE)
    Wlin = jax.random.uniform(ks[3], (NUM_LABELS, HID), jnp.float32, -INITRANGE, INITRANGE)
    b_lin = jax.random.uniform(ks[4], (NUM_LABELS,), jnp.float32, -INITRANGE, INITRANGE)
    return {"emb": emb, "W0": W0, "Ws": Ws,
            "Wlin_T": Wlin.T, "b_lin": b_lin.reshape(1, NUM_LABELS)}


def prepare_params(params):
    """One-time layout plumbing (hoisted out of the per-call forward).

    * tbl = emb @ W0[:E]: the embedded input is only ever read through
      x @ W0[:E], so the gather and input projection collapse into a single
      (VOCAB, 2H) lookup table (rows padded to a sublane multiple).
    * ws: per-predecessor-group slab, columns [c cols | h cols by activation].
    * all MXU operands pre-cast to bf16 (f32 accumulation happens in-kernel).
    """
    tbl = params["emb"] @ params["W0"][:EMB]                       # (V, 2H) f32
    vp = ((VOCAB + 7) // 8) * 8
    if vp != VOCAB:
        tbl = jnp.pad(tbl, ((0, vp - VOCAB), (0, 0)))
    cols = []
    for _pred, nodes, _runs in GROUPS:
        cols += [params["Ws"][n][:, :HID] for n in nodes]          # c halves
        cols += [params["Ws"][n][:, HID:] for n in nodes]          # h halves
    return {
        "tbl": tbl.astype(jnp.bfloat16),                           # (Vp, 2H)
        "w0h": params["W0"][EMB:].astype(jnp.bfloat16),            # (H, 2H)
        "ws": jnp.concatenate(cols, axis=-1).astype(jnp.bfloat16), # (H, STEPS*2H)
        "wlin": params["Wlin_T"].astype(jnp.bfloat16),             # (H, 4)
        "b": params["b_lin"],                                      # (1, 4) f32
    }


# ------------------------------- wrapper --------------------------------------
@jax.jit
def rnn_model_forward(X, hidden, kparams):
    # Bug-compatible with the reference: the recurrence iterates over X's dim 0.
    T, B = X.shape
    ids = X.reshape(T * B, 1).astype(jnp.int32)
    h0 = hidden[0]

    vmem = lambda: pl.BlockSpec(memory_space=pltpu.MemorySpace.VMEM)
    # Single invocation, no grid: every operand (< 100 KB total) is pinned in
    # VMEM for the whole recurrence via explicit whole-array VMEM specs.  If
    # shapes ever grow, re-derive the budget (v7x: 64 MiB VMEM, ~32 MiB scoped
    # default) and switch large inputs to pl.ANY + manual double-buffered DMA.
    # TODO(synk): for many independent (X, hidden) instances, add a leading
    # "instance" grid axis with dimension_semantics=("parallel",) so both v7x
    # TensorCores are used; a single serial recurrence pins one TC.
    a_hat, probs = pl.pallas_call(
        darts_rnn_kernel,
        out_shape=(jax.ShapeDtypeStruct((B, NUM_LABELS), jnp.float32),
                   jax.ShapeDtypeStruct((B, NUM_LABELS), jnp.float32)),
        in_specs=[vmem() for _ in range(7)],
        out_specs=(vmem(), vmem()),
        scratch_shapes=[pltpu.VMEM((T * B, 2 * HID), jnp.float32)],
    )(ids, h0, kparams["tbl"], kparams["w0h"], kparams["ws"],
      kparams["wlin"], kparams["b"])
    return a_hat, probs


# ------------------------------ pure-JAX reference -----------------------------
def _act_ref(name, x):
    if name == "tanh":
        return jnp.tanh(x)
    if name == "relu":
        return jnp.maximum(x, 0.0)
    if name == "sigmoid":
        return jax.nn.sigmoid(x)
    if name == "identity":
        return x
    raise NotImplementedError(name)


def ref_forward(X, hidden, params):
    x_emb = params["emb"][X]
    T, _, E = x_emb.shape
    H = HID
    h = hidden[0]
    for t in range(T):
        x = x_emb[t]
        ch0 = x @ params["W0"][:E] + h @ params["W0"][E:]
        c0 = jax.nn.sigmoid(ch0[:, :H])
        h0 = jnp.tanh(ch0[:, H:])
        states = [h + c0 * (h0 - h)]
        for i, (name, pred) in enumerate(GENOTYPE.recurrent):
            sp = states[pred]
            ch = sp @ params["Ws"][i]
            c = jax.nn.sigmoid(ch[:, :H])
            hh = _act_ref(name, ch[:, H:])
            states.append(sp + c * (hh - sp))
        h = sum(states[i] for i in GENOTYPE.concat) / float(len(GENOTYPE.concat))
    a = h @ params["Wlin_T"] + params["b_lin"]
    return a, jax.nn.softmax(a, axis=1)


if __name__ == "__main__":
    key = jax.random.PRNGKey(0)
    kp, kx = jax.random.split(key)
    params = init_params(kp)
    kparams = prepare_params(params)   # one-time; NOT per-forward-call work

    BATCH, SEQ = 4, 8                  # X: (batch, seq) token ids
    X = jax.random.randint(kx, (BATCH, SEQ), 1, VOCAB)
    # hidden[0] must have shape (X.shape[1], H) for the reference forward.
    hidden = jnp.zeros((1, SEQ, HID), jnp.float32)

    a_hat, probs = rnn_model_forward(X, hidden, kparams)
    jax.block_until_ready((a_hat, probs))

    ra, rp = ref_forward(X, hidden, params)
    assert jnp.allclose(a_hat, ra, atol=5e-3, rtol=5e-3), \
        float(jnp.max(jnp.abs(a_hat - ra)))
    assert jnp.allclose(probs, rp, atol=5e-3, rtol=5e-3), \
        float(jnp.max(jnp.abs(probs - rp)))
    print("KERNEL_OK")
</pallas_src>

<mosaic_0001>
module attributes {stable_mosaic.version = 11 : i64} {
  func.func @darts_rnn_kernel(%arg0: memref<32x1xi32, #tpu.memory_space<vmem>>, %arg1: memref<8x32xf32, #tpu.memory_space<vmem>>, %arg2: memref<56x64xbf16, #tpu.memory_space<vmem>>, %arg3: memref<32x64xbf16, #tpu.memory_space<vmem>>, %arg4: memref<32x512xbf16, #tpu.memory_space<vmem>>, %arg5: memref<32x4xbf16, #tpu.memory_space<vmem>>, %arg6: memref<1x4xf32, #tpu.memory_space<vmem>>, %arg7: memref<8x4xf32, #tpu.memory_space<vmem>>, %arg8: memref<8x4xf32, #tpu.memory_space<vmem>>, %arg9: memref<32x64xf32, #tpu.memory_space<vmem>>) attributes {dimension_semantics = [], scalar_prefetch = 0 : i64, scratch_operands = 1 : i64, tpu.core_type = #tpu.core_type<tc>} {
    %c0 = arith.constant 0 : index
    %c0_0 = arith.constant 0 : index
    %0 = vector.load %arg0[%c0, %c0_0] : memref<32x1xi32, #tpu.memory_space<vmem>>, vector<32x1xi32>
    %1 = tpu.iota {dimensions = array<i32: 1>} : vector<32x56xi32>
    %2 = vector.broadcast %0 : vector<32x1xi32> to vector<32x56xi32>
    %3 = arith.cmpi eq, %2, %1 : vector<32x56xi32>
    %4 = arith.extui %3 : vector<32x56xi1> to vector<32x56xi32>
    %5 = arith.sitofp %4 : vector<32x56xi32> to vector<32x56xf32>
    %6 = arith.truncf %5 : vector<32x56xf32> to vector<32x56xbf16>
    %c0_1 = arith.constant 0 : index
    %c0_2 = arith.constant 0 : index
    %7 = vector.load %arg2[%c0_1, %c0_2] : memref<56x64xbf16, #tpu.memory_space<vmem>>, vector<56x64xbf16>
    %cst = arith.constant dense<0.000000e+00> : vector<32x64xf32>
    %8 = tpu.matmul %6, %7, %cst {dimension_numbers = #tpu.dot_dimension_numbers<[1], [0], [0], [1], [0, 0, 1, 1], [], []>} : vector<32x56xbf16>, vector<56x64xbf16>, vector<32x64xf32> -> vector<32x64xf32>
    %c0_3 = arith.constant 0 : index
    %c0_4 = arith.constant 0 : index
    %9 = vector.load %arg9[%c0_3, %c0_4] : memref<32x64xf32, #tpu.memory_space<vmem>>, vector<32x64xf32>
    tpu.vector_store %arg9[%c0_3, %c0_4], %8 {strides = array<i32>} : memref<32x64xf32, #tpu.memory_space<vmem>>, vector<32x64xf32>,
    %c0_5 = arith.constant 0 : index
    %c0_6 = arith.constant 0 : index
    %10 = vector.load %arg1[%c0_5, %c0_6] : memref<8x32xf32, #tpu.memory_space<vmem>>, vector<8x32xf32>
    %c0_i32 = arith.constant 0 : i32
    %c8_i32 = arith.constant 8 : i32
    %11 = arith.muli %c0_i32, %c8_i32 : i32
    %12 = arith.index_cast %11 : i32 to index
    %c0_7 = arith.constant 0 : index
    %13 = vector.load %arg9[%12, %c0_7] : memref<32x64xf32, #tpu.memory_space<vmem>>, vector<8x64xf32>
    %14 = arith.truncf %10 : vector<8x32xf32> to vector<8x32xbf16>
    %c0_8 = arith.constant 0 : index
    %c0_9 = arith.constant 0 : index
    %15 = vector.load %arg3[%c0_8, %c0_9] : memref<32x64xbf16, #tpu.memory_space<vmem>>, vector<32x64xbf16>
    %cst_10 = arith.constant dense<0.000000e+00> : vector<8x64xf32>
    %16 = tpu.matmul %14, %15, %cst_10 {dimension_numbers = #tpu.dot_dimension_numbers<[1], [0], [0], [1], [0, 0, 1, 1], [], []>} : vector<8x32xbf16>, vector<32x64xbf16>, vector<8x64xf32> -> vector<8x64xf32>
    %17 = arith.addf %13, %16 : vector<8x64xf32>
    %18 = vector.extract_strided_slice %17 {offsets = [0, 0], sizes = [8, 32], strides = [1, 1]} : vector<8x64xf32> to vector<8x32xf32>
    %cst_11 = arith.constant 5.000000e-01 : f32
    %19 = vector.broadcast %cst_11 : f32 to vector<8x32xf32>
    %20 = arith.mulf %19, %18 : vector<8x32xf32>
    %21 = math.tanh %20 : vector<8x32xf32>
    %cst_12 = arith.constant 5.000000e-01 : f32
    %22 = vector.broadcast %cst_12 : f32 to vector<8x32xf32>
    %23 = arith.mulf %22, %21 : vector<8x32xf32>
    %cst_13 = arith.constant 5.000000e-01 : f32
    %24 = vector.broadcast %cst_13 : f32 to vector<8x32xf32>
    %25 = arith.addf %23, %24 : vector<8x32xf32>
    %26 = vector.extract_strided_slice %17 {offsets = [0, 32], sizes = [8, 32], strides = [1, 1]} : vector<8x64xf32> to vector<8x32xf32>
    %27 = math.tanh %26 : vector<8x32xf32>
    %28 = arith.subf %27, %10 : vector<8x32xf32>
    %29 = arith.mulf %25, %28 : vector<8x32xf32>
    %30 = arith.addf %10, %29 : vector<8x32xf32>
    %31 = arith.truncf %30 : vector<8x32xf32> to vector<8x32xbf16>
    %c0_14 = arith.constant 0 : index
    %c0_15 = arith.constant 0 : index
    %32 = vector.load %arg4[%c0_14, %c0_15] : memref<32x512xbf16, #tpu.memory_space<vmem>>, vector<32x64xbf16>
    %cst_16 = arith.constant dense<0.000000e+00> : vector<8x64xf32>
    %33 = tpu.matmul %31, %32, %cst_16 {dimension_numbers = #tpu.dot_dimension_numbers<[1], [0], [0], [1], [0, 0, 1, 1], [], []>} : vector<8x32xbf16>, vector<32x64xbf16>, vector<8x64xf32> -> vector<8x64xf32>
    %34 = vector.extract_strided_slice %33 {offsets = [0, 0], sizes = [8, 32], strides = [1, 1]} : vector<8x64xf32> to vector<8x32xf32>
    %cst_17 = arith.constant 5.000000e-01 : f32
    %35 = vector.broadcast %cst_17 : f32 to vector<8x32xf32>
    %36 = arith.mulf %35, %34 : vector<8x32xf32>
    %37 = math.tanh %36 : vector<8x32xf32>
    %cst_18 = arith.constant 5.000000e-01 : f32
    %38 = vector.broadcast %cst_18 : f32 to vector<8x32xf32>
    %39 = arith.mulf %38, %37 : vector<8x32xf32>
    %cst_19 = arith.constant 5.000000e-01 : f32
    %40 = vector.broadcast %cst_19 : f32 to vector<8x32xf32>
    %41 = arith.addf %39, %40 : vector<8x32xf32>
    %42 = vector.extract_strided_slice %33 {offsets = [0, 32], sizes = [8, 32], strides = [1, 1]} : vector<8x64xf32> to vector<8x32xf32>
    %cst_20 = arith.constant 5.000000e-01 : f32
    %43 = vector.broadcast %cst_20 : f32 to vector<8x32xf32>
    %44 = arith.mulf %43, %42 : vector<8x32xf32>
    %45 = math.tanh %44 : vector<8x32xf32>
    %cst_21 = arith.constant 5.000000e-01 : f32
    %46 = vector.broadcast %cst_21 : f32 to vector<8x32xf32>
    %47 = arith.mulf %46, %45 : vector<8x32xf32>
    %cst_22 = arith.constant 5.000000e-01 : f32
    %48 = vector.broadcast %cst_22 : f32 to vector<8x32xf32>
    %49 = arith.addf %47, %48 : vector<8x32xf32>
    %50 = arith.subf %49, %30 : vector<8x32xf32>
    %51 = arith.mulf %41, %50 : vector<8x32xf32>
    %52 = arith.addf %30, %51 : vector<8x32xf32>
    %53 = arith.truncf %52 : vector<8x32xf32> to vector<8x32xbf16>
    %c0_23 = arith.constant 0 : index
    %c64 = arith.constant 64 : index
    %54 = vector.load %arg4[%c0_23, %c64] : memref<32x512xbf16, #tpu.memory_space<vmem>>, vector<32x192xbf16>
    %cst_24 = arith.constant dense<0.000000e+00> : vector<8x192xf32>
    %55 = tpu.matmul %53, %54, %cst_24 {dimension_numbers = #tpu.dot_dimension_numbers<[1], [0], [0], [1], [0, 0, 1, 1], [], []>} : vector<8x32xbf16>, vector<32x192xbf16>, vector<8x192xf32> -> vector<8x192xf32>
    %56 = vector.extract_strided_slice %55 {offsets = [0, 0], sizes = [8, 96], strides = [1, 1]} : vector<8x192xf32> to vector<8x96xf32>
    %cst_25 = arith.constant 5.000000e-01 : f32
    %57 = vector.broadcast %cst_25 : f32 to vector<8x96xf32>
    %58 = arith.mulf %57, %56 : vector<8x96xf32>
    %59 = math.tanh %58 : vector<8x96xf32>
    %cst_26 = arith.constant 5.000000e-01 : f32
    %60 = vector.broadcast %cst_26 : f32 to vector<8x96xf32>
    %61 = arith.mulf %60, %59 : vector<8x96xf32>
    %cst_27 = arith.constant 5.000000e-01 : f32
    %62 = vector.broadcast %cst_27 : f32 to vector<8x96xf32>
    %63 = arith.addf %61, %62 : vector<8x96xf32>
    %64 = vector.extract_strided_slice %55 {offsets = [0, 96], sizes = [8, 32], strides = [1, 1]} : vector<8x192xf32> to vector<8x32xf32>
    %65 = vector.extract_strided_slice %63 {offsets = [0, 0], sizes = [8, 32], strides = [1, 1]} : vector<8x96xf32> to vector<8x32xf32>
    %66 = arith.subf %64, %52 : vector<8x32xf32>
    %67 = arith.mulf %65, %66 : vector<8x32xf32>
    %68 = arith.addf %52, %67 : vector<8x32xf32>
    %69 = vector.extract_strided_slice %55 {offsets = [0, 128], sizes = [8, 64], strides = [1, 1]} : vector<8x192xf32> to vector<8x64xf32>
    %cst_28 = arith.constant 0.000000e+00 : f32
    %70 = vector.broadcast %cst_28 : f32 to vector<8x64xf32>
    %71 = arith.maximumf %69, %70 : vector<8x64xf32>
    %72 = vector.extract_strided_slice %63 {offsets = [0, 32], sizes = [8, 32], strides = [1, 1]} : vector<8x96xf32> to vector<8x32xf32>
    %73 = vector.extract_strided_slice %71 {offsets = [0, 0], sizes = [8, 32], strides = [1, 1]} : vector<8x64xf32> to vector<8x32xf32>
    %74 = arith.subf %73, %52 : vector<8x32xf32>
    %75 = arith.mulf %72, %74 : vector<8x32xf32>
    %76 = arith.addf %52, %75 : vector<8x32xf32>
    %77 = vector.extract_strided_slice %63 {offsets = [0, 64], sizes = [8, 32], strides = [1, 1]} : vector<8x96xf32> to vector<8x32xf32>
    %78 = vector.extract_strided_slice %71 {offsets = [0, 32], sizes = [8, 32], strides = [1, 1]} : vector<8x64xf32> to vector<8x32xf32>
    %79 = arith.subf %78, %52 : vector<8x32xf32>
    %80 = arith.mulf %77, %79 : vector<8x32xf32>
    %81 = arith.addf %52, %80 : vector<8x32xf32>
    %82 = arith.truncf %76 : vector<8x32xf32> to vector<8x32xbf16>
    %c0_29 = arith.constant 0 : index
    %c256 = arith.constant 256 : index
    %83 = vector.load %arg4[%c0_29, %c256] : memref<32x512xbf16, #tpu.memory_space<vmem>>, vector<32x64xbf16>
    %cst_30 = arith.constant dense<0.000000e+00> : vector<8x64xf32>
    %84 = tpu.matmul %82, %83, %cst_30 {dimension_numbers = #tpu.dot_dimension_numbers<[1], [0], [0], [1], [0, 0, 1, 1], [], []>} : vector<8x32xbf16>, vector<32x64xbf16>, vector<8x64xf32> -> vector<8x64xf32>
    %85 = vector.extract_strided_slice %84 {offsets = [0, 0], sizes = [8, 32], strides = [1, 1]} : vector<8x64xf32> to vector<8x32xf32>
    %cst_31 = arith.constant 5.000000e-01 : f32
    %86 = vector.broadcast %cst_31 : f32 to vector<8x32xf32>
    %87 = arith.mulf %86, %85 : vector<8x32xf32>
    %88 = math.tanh %87 : vector<8x32xf32>
    %cst_32 = arith.constant 5.000000e-01 : f32
    %89 = vector.broadcast %cst_32 : f32 to vector<8x32xf32>
    %90 = arith.mulf %89, %88 : vector<8x32xf32>
    %cst_33 = arith.constant 5.000000e-01 : f32
    %91 = vector.broadcast %cst_33 : f32 to vector<8x32xf32>
    %92 = arith.addf %90, %91 : vector<8x32xf32>
    %93 = vector.extract_strided_slice %84 {offsets = [0, 32], sizes = [8, 32], strides = [1, 1]} : vector<8x64xf32> to vector<8x32xf32>
    %94 = math.tanh %93 : vector<8x32xf32>
    %95 = arith.subf %94, %76 : vector<8x32xf32>
    %96 = arith.mulf %92, %95 : vector<8x32xf32>
    %97 = arith.addf %76, %96 : vector<8x32xf32>
    %98 = arith.truncf %81 : vector<8x32xf32> to vector<8x32xbf16>
    %c0_34 = arith.constant 0 : index
    %c320 = arith.constant 320 : index
    %99 = vector.load %arg4[%c0_34, %c320] : memref<32x512xbf16, #tpu.memory_space<vmem>>, vector<32x64xbf16>
    %cst_35 = arith.constant dense<0.000000e+00> : vector<8x64xf32>
    %100 = tpu.matmul %98, %99, %cst_35 {dimension_numbers = #tpu.dot_dimension_numbers<[1], [0], [0], [1], [0, 0, 1, 1], [], []>} : vector<8x32xbf16>, vector<32x64xbf16>, vector<8x64xf32> -> vector<8x64xf32>
    %101 = vector.extract_strided_slice %100 {offsets = [0, 0], sizes = [8, 32], strides = [1, 1]} : vector<8x64xf32> to vector<8x32xf32>
    %cst_36 = arith.constant 5.000000e-01 : f32
    %102 = vector.broadcast %cst_36 : f32 to vector<8x32xf32>
    %103 = arith.mulf %102, %101 : vector<8x32xf32>
    %104 = math.tanh %103 : vector<8x32xf32>
    %cst_37 = arith.constant 5.000000e-01 : f32
    %105 = vector.broadcast %cst_37 : f32 to vector<8x32xf32>
    %106 = arith.mulf %105, %104 : vector<8x32xf32>
    %cst_38 = arith.constant 5.000000e-01 : f32
    %107 = vector.broadcast %cst_38 : f32 to vector<8x32xf32>
    %108 = arith.addf %106, %107 : vector<8x32xf32>
    %109 = vector.extract_strided_slice %100 {offsets = [0, 32], sizes = [8, 32], strides = [1, 1]} : vector<8x64xf32> to vector<8x32xf32>
    %110 = math.tanh %109 : vector<8x32xf32>
    %111 = arith.subf %110, %81 : vector<8x32xf32>
    %112 = arith.mulf %108, %111 : vector<8x32xf32>
    %113 = arith.addf %81, %112 : vector<8x32xf32>
    %114 = arith.truncf %97 : vector<8x32xf32> to vector<8x32xbf16>
    %c0_39 = arith.constant 0 : index
    %c384 = arith.constant 384 : index
    %115 = vector.load %arg4[%c0_39, %c384] : memref<32x512xbf16, #tpu.memory_space<vmem>>, vector<32x128xbf16>
    %cst_40 = arith.constant dense<0.000000e+00> : vector<8x128xf32>
    %116 = tpu.matmul %114, %115, %cst_40 {dimension_numbers = #tpu.dot_dimension_numbers<[1], [0], [0], [1], [0, 0, 1, 1], [], []>} : vector<8x32xbf16>, vector<32x128xbf16>, vector<8x128xf32> -> vector<8x128xf32>
    %117 = vector.extract_strided_slice %116 {offsets = [0, 0], sizes = [8, 64], strides = [1, 1]} : vector<8x128xf32> to vector<8x64xf32>
    %cst_41 = arith.constant 5.000000e-01 : f32
    %118 = vector.broadcast %cst_41 : f32 to vector<8x64xf32>
    %119 = arith.mulf %118, %117 : vector<8x64xf32>
    %120 = math.tanh %119 : vector<8x64xf32>
    %cst_42 = arith.constant 5.000000e-01 : f32
    %121 = vector.broadcast %cst_42 : f32 to vector<8x64xf32>
    %122 = arith.mulf %121, %120 : vector<8x64xf32>
    %cst_43 = arith.constant 5.000000e-01 : f32
    %123 = vector.broadcast %cst_43 : f32 to vector<8x64xf32>
    %124 = arith.addf %122, %123 : vector<8x64xf32>
    %125 = vector.extract_strided_slice %116 {offsets = [0, 64], sizes = [8, 32], strides = [1, 1]} : vector<8x128xf32> to vector<8x32xf32>
    %cst_44 = arith.constant 0.000000e+00 : f32
    %126 = vector.broadcast %cst_44 : f32 to vector<8x32xf32>
    %127 = arith.maximumf %125, %126 : vector<8x32xf32>
    %128 = vector.extract_strided_slice %124 {offsets = [0, 0], sizes = [8, 32], strides = [1, 1]} : vector<8x64xf32> to vector<8x32xf32>
    %129 = arith.subf %127, %97 : vector<8x32xf32>
    %130 = arith.mulf %128, %129 : vector<8x32xf32>
    %131 = arith.addf %97, %130 : vector<8x32xf32>
    %132 = vector.extract_strided_slice %116 {offsets = [0, 96], sizes = [8, 32], strides = [1, 1]} : vector<8x128xf32> to vector<8x32xf32>
    %cst_45 = arith.constant 5.000000e-01 : f32
    %133 = vector.broadcast %cst_45 : f32 to vector<8x32xf32>
    %134 = arith.mulf %133, %132 : vector<8x32xf32>
    %135 = math.tanh %134 : vector<8x32xf32>
    %cst_46 = arith.constant 5.000000e-01 : f32
    %136 = vector.broadcast %cst_46 : f32 to vector<8x32xf32>
    %137 = arith.mulf %136, %135 : vector<8x32xf32>
    %cst_47 = arith.constant 5.000000e-01 : f32
    %138 = vector.broadcast %cst_47 : f32 to vector<8x32xf32>
    %139 = arith.addf %137, %138 : vector<8x32xf32>
    %140 = vector.extract_strided_slice %124 {offsets = [0, 32], sizes = [8, 32], strides = [1, 1]} : vector<8x64xf32> to vector<8x32xf32>
    %141 = arith.subf %139, %97 : vector<8x32xf32>
    %142 = arith.mulf %140, %141 : vector<8x32xf32>
    %143 = arith.addf %97, %142 : vector<8x32xf32>
    %144 = arith.addf %52, %76 : vector<8x32xf32>
    %145 = arith.addf %144, %81 : vector<8x32xf32>
    %146 = arith.addf %145, %68 : vector<8x32xf32>
    %147 = arith.addf %146, %97 : vector<8x32xf32>
    %148 = arith.addf %147, %143 : vector<8x32xf32>
    %149 = arith.addf %148, %113 : vector<8x32xf32>
    %150 = arith.addf %149, %131 : vector<8x32xf32>
    %cst_48 = arith.constant 1.250000e-01 : f32
    %151 = vector.broadcast %cst_48 : f32 to vector<8x32xf32>
    %152 = arith.mulf %150, %151 : vector<8x32xf32>
    %c1_i32 = arith.constant 1 : i32
    %c8_i32_49 = arith.constant 8 : i32
    %153 = arith.muli %c1_i32, %c8_i32_49 : i32
    %154 = arith.index_cast %153 : i32 to index
    %c0_50 = arith.constant 0 : index
    %155 = vector.load %arg9[%154, %c0_50] : memref<32x64xf32, #tpu.memory_space<vmem>>, vector<8x64xf32>
    %156 = arith.truncf %152 : vector<8x32xf32> to vector<8x32xbf16>
    %c0_51 = arith.constant 0 : index
    %c0_52 = arith.constant 0 : index
    %157 = vector.load %arg3[%c0_51, %c0_52] : memref<32x64xbf16, #tpu.memory_space<vmem>>, vector<32x64xbf16>
    %cst_53 = arith.constant dense<0.000000e+00> : vector<8x64xf32>
    %158 = tpu.matmul %156, %157, %cst_53 {dimension_numbers = #tpu.dot_dimension_numbers<[1], [0], [0], [1], [0, 0, 1, 1], [], []>} : vector<8x32xbf16>, vector<32x64xbf16>, vector<8x64xf32> -> vector<8x64xf32>
    %159 = arith.addf %155, %158 : vector<8x64xf32>
    %160 = vector.extract_strided_slice %159 {offsets = [0, 0], sizes = [8, 32], strides = [1, 1]} : vector<8x64xf32> to vector<8x32xf32>
    %cst_54 = arith.constant 5.000000e-01 : f32
    %161 = vector.broadcast %cst_54 : f32 to vector<8x32xf32>
    %162 = arith.mulf %161, %160 : vector<8x32xf32>
    %163 = math.tanh %162 : vector<8x32xf32>
    %cst_55 = arith.constant 5.000000e-01 : f32
    %164 = vector.broadcast %cst_55 : f32 to vector<8x32xf32>
    %165 = arith.mulf %164, %163 : vector<8x32xf32>
    %cst_56 = arith.constant 5.000000e-01 : f32
    %166 = vector.broadcast %cst_56 : f32 to vector<8x32xf32>
    %167 = arith.addf %165, %166 : vector<8x32xf32>
    %168 = vector.extract_strided_slice %159 {offsets = [0, 32], sizes = [8, 32], strides = [1, 1]} : vector<8x64xf32> to vector<8x32xf32>
    %169 = math.tanh %168 : vector<8x32xf32>
    %170 = arith.subf %169, %152 : vector<8x32xf32>
    %171 = arith.mulf %167, %170 : vector<8x32xf32>
    %172 = arith.addf %152, %171 : vector<8x32xf32>
    %173 = arith.truncf %172 : vector<8x32xf32> to vector<8x32xbf16>
    %c0_57 = arith.constant 0 : index
    %c0_58 = arith.constant 0 : index
    %174 = vector.load %arg4[%c0_57, %c0_58] : memref<32x512xbf16, #tpu.memory_space<vmem>>, vector<32x64xbf16>
    %cst_59 = arith.constant dense<0.000000e+00> : vector<8x64xf32>
    %175 = tpu.matmul %173, %174, %cst_59 {dimension_numbers = #tpu.dot_dimension_numbers<[1], [0], [0], [1], [0, 0, 1, 1], [], []>} : vector<8x32xbf16>, vector<32x64xbf16>, vector<8x64xf32> -> vector<8x64xf32>
    %176 = vector.extract_strided_slice %175 {offsets = [0, 0], sizes = [8, 32], strides = [1, 1]} : vector<8x64xf32> to vector<8x32xf32>
    %cst_60 = arith.constant 5.000000e-01 : f32
    %177 = vector.broadcast %cst_60 : f32 to vector<8x32xf32>
    %178 = arith.mulf %177, %176 : vector<8x32xf32>
    %179 = math.tanh %178 : vector<8x32xf32>
    %cst_61 = arith.constant 5.000000e-01 : f32
    %180 = vector.broadcast %cst_61 : f32 to vector<8x32xf32>
    %181 = arith.mulf %180, %179 : vector<8x32xf32>
    %cst_62 = arith.constant 5.000000e-01 : f32
    %182 = vector.broadcast %cst_62 : f32 to vector<8x32xf32>
    %183 = arith.addf %181, %182 : vector<8x32xf32>
    %184 = vector.extract_strided_slice %175 {offsets = [0, 32], sizes = [8, 32], strides = [1, 1]} : vector<8x64xf32> to vector<8x32xf32>
    %cst_63 = arith.constant 5.000000e-01 : f32
    %185 = vector.broadcast %cst_63 : f32 to vector<8x32xf32>
    %186 = arith.mulf %185, %184 : vector<8x32xf32>
    %187 = math.tanh %186 : vector<8x32xf32>
    %cst_64 = arith.constant 5.000000e-01 : f32
    %188 = vector.broadcast %cst_64 : f32 to vector<8x32xf32>
    %189 = arith.mulf %188, %187 : vector<8x32xf32>
    %cst_65 = arith.constant 5.000000e-01 : f32
    %190 = vector.broadcast %cst_65 : f32 to vector<8x32xf32>
    %191 = arith.addf %189, %190 : vector<8x32xf32>
    %192 = arith.subf %191, %172 : vector<8x32xf32>
    %193 = arith.mulf %183, %192 : vector<8x32xf32>
    %194 = arith.addf %172, %193 : vector<8x32xf32>
    %195 = arith.truncf %194 : vector<8x32xf32> to vector<8x32xbf16>
    %c0_66 = arith.constant 0 : index
    %c64_67 = arith.constant 64 : index
    %196 = vector.load %arg4[%c0_66, %c64_67] : memref<32x512xbf16, #tpu.memory_space<vmem>>, vector<32x192xbf16>
    %cst_68 = arith.constant dense<0.000000e+00> : vector<8x192xf32>
    %197 = tpu.matmul %195, %196, %cst_68 {dimension_numbers = #tpu.dot_dimension_numbers<[1], [0], [0], [1], [0, 0, 1, 1], [], []>} : vector<8x32xbf16>, vector<32x192xbf16>, vector<8x192xf32> -> vector<8x192xf32>
    %198 = vector.extract_strided_slice %197 {offsets = [0, 0], sizes = [8, 96], strides = [1, 1]} : vector<8x192xf32> to vector<8x96xf32>
    %cst_69 = arith.constant 5.000000e-01 : f32
    %199 = vector.broadcast %cst_69 : f32 to vector<8x96xf32>
    %200 = arith.mulf %199, %198 : vector<8x96xf32>
    %201 = math.tanh %200 : vector<8x96xf32>
    %cst_70 = arith.constant 5.000000e-01 : f32
    %202 = vector.broadcast %cst_70 : f32 to vector<8x96xf32>
    %203 = arith.mulf %202, %201 : vector<8x96xf32>
    %cst_71 = arith.constant 5.000000e-01 : f32
    %204 = vector.broadcast %cst_71 : f32 to vector<8x96xf32>
    %205 = arith.addf %203, %204 : vector<8x96xf32>
    %206 = vector.extract_strided_slice %197 {offsets = [0, 96], sizes = [8, 32], strides = [1, 1]} : vector<8x192xf32> to vector<8x32xf32>
    %207 = vector.extract_strided_slice %205 {offsets = [0, 0], sizes = [8, 32], strides = [1, 1]} : vector<8x96xf32> to vector<8x32xf32>
    %208 = arith.subf %206, %194 : vector<8x32xf32>
    %209 = arith.mulf %207, %208 : vector<8x32xf32>
    %210 = arith.addf %194, %209 : vector<8x32xf32>
    %211 = vector.extract_strided_slice %197 {offsets = [0, 128], sizes = [8, 64], strides = [1, 1]} : vector<8x192xf32> to vector<8x64xf32>
    %cst_72 = arith.constant 0.000000e+00 : f32
    %212 = vector.broadcast %cst_72 : f32 to vector<8x64xf32>
    %213 = arith.maximumf %211, %212 : vector<8x64xf32>
    %214 = vector.extract_strided_slice %205 {offsets = [0, 32], sizes = [8, 32], strides = [1, 1]} : vector<8x96xf32> to vector<8x32xf32>
    %215 = vector.extract_strided_slice %213 {offsets = [0, 0], sizes = [8, 32], strides = [1, 1]} : vector<8x64xf32> to vector<8x32xf32>
    %216 = arith.subf %215, %194 : vector<8x32xf32>
    %217 = arith.mulf %214, %216 : vector<8x32xf32>
    %218 = arith.addf %194, %217 : vector<8x32xf32>
    %219 = vector.extract_strided_slice %205 {offsets = [0, 64], sizes = [8, 32], strides = [1, 1]} : vector<8x96xf32> to vector<8x32xf32>
    %220 = vector.extract_strided_slice %213 {offsets = [0, 32], sizes = [8, 32], strides = [1, 1]} : vector<8x64xf32> to vector<8x32xf32>
    %221 = arith.subf %220, %194 : vector<8x32xf32>
    %222 = arith.mulf %219, %221 : vector<8x32xf32>
    %223 = arith.addf %194, %222 : vector<8x32xf32>
    %224 = arith.truncf %218 : vector<8x32xf32> to vector<8x32xbf16>
    %c0_73 = arith.constant 0 : index
    %c256_74 = arith.constant 256 : index
    %225 = vector.load %arg4[%c0_73, %c256_74] : memref<32x512xbf16, #tpu.memory_space<vmem>>, vector<32x64xbf16>
    %cst_75 = arith.constant dense<0.000000e+00> : vector<8x64xf32>
    %226 = tpu.matmul %224, %225, %cst_75 {dimension_numbers = #tpu.dot_dimension_numbers<[1], [0], [0], [1], [0, 0, 1, 1], [], []>} : vector<8x32xbf16>, vector<32x64xbf16>, vector<8x64xf32> -> vector<8x64xf32>
    %227 = vector.extract_strided_slice %226 {offsets = [0, 0], sizes = [8, 32], strides = [1, 1]} : vector<8x64xf32> to vector<8x32xf32>
    %cst_76 = arith.constant 5.000000e-01 : f32
    %228 = vector.broadcast %cst_76 : f32 to vector<8x32xf32>
    %229 = arith.mulf %228, %227 : vector<8x32xf32>
    %230 = math.tanh %229 : vector<8x32xf32>
    %cst_77 = arith.constant 5.000000e-01 : f32
    %231 = vector.broadcast %cst_77 : f32 to vector<8x32xf32>
    %232 = arith.mulf %231, %230 : vector<8x32xf32>
    %cst_78 = arith.constant 5.000000e-01 : f32
    %233 = vector.broadcast %cst_78 : f32 to vector<8x32xf32>
    %234 = arith.addf %232, %233 : vector<8x32xf32>
    %235 = vector.extract_strided_slice %226 {offsets = [0, 32], sizes = [8, 32], strides = [1, 1]} : vector<8x64xf32> to vector<8x32xf32>
    %236 = math.tanh %235 : vector<8x32xf32>
    %237 = arith.subf %236, %218 : vector<8x32xf32>
    %238 = arith.mulf %234, %237 : vector<8x32xf32>
    %239 = arith.addf %218, %238 : vector<8x32xf32>
    %240 = arith.truncf %223 : vector<8x32xf32> to vector<8x32xbf16>
    %c0_79 = arith.constant 0 : index
    %c320_80 = arith.constant 320 : index
    %241 = vector.load %arg4[%c0_79, %c320_80] : memref<32x512xbf16, #tpu.memory_space<vmem>>, vector<32x64xbf16>
    %cst_81 = arith.constant dense<0.000000e+00> : vector<8x64xf32>
    %242 = tpu.matmul %240, %241, %cst_81 {dimension_numbers = #tpu.dot_dimension_numbers<[1], [0], [0], [1], [0, 0, 1, 1], [], []>} : vector<8x32xbf16>, vector<32x64xbf16>, vector<8x64xf32> -> vector<8x64xf32>
    %243 = vector.extract_strided_slice %242 {offsets = [0, 0], sizes = [8, 32], strides = [1, 1]} : vector<8x64xf32> to vector<8x32xf32>
    %cst_82 = arith.constant 5.000000e-01 : f32
    %244 = vector.broadcast %cst_82 : f32 to vector<8x32xf32>
    %245 = arith.mulf %244, %243 : vector<8x32xf32>
    %246 = math.tanh %245 : vector<8x32xf32>
    %cst_83 = arith.constant 5.000000e-01 : f32
    %247 = vector.broadcast %cst_83 : f32 to vector<8x32xf32>
    %248 = arith.mulf %247, %246 : vector<8x32xf32>
    %cst_84 = arith.constant 5.000000e-01 : f32
    %249 = vector.broadcast %cst_84 : f32 to vector<8x32xf32>
    %250 = arith.addf %248, %249 : vector<8x32xf32>
    %251 = vector.extract_strided_slice %242 {offsets = [0, 32], sizes = [8, 32], strides = [1, 1]} : vector<8x64xf32> to vector<8x32xf32>
    %252 = math.tanh %251 : vector<8x32xf32>
    %253 = arith.subf %252, %223 : vector<8x32xf32>
    %254 = arith.mulf %250, %253 : vector<8x32xf32>
    %255 = arith.addf %223, %254 : vector<8x32xf32>
    %256 = arith.truncf %239 : vector<8x32xf32> to vector<8x32xbf16>
    %c0_85 = arith.constant 0 : index
    %c384_86 = arith.constant 384 : index
    %257 = vector.load %arg4[%c0_85, %c384_86] : memref<32x512xbf16, #tpu.memory_space<vmem>>, vector<32x128xbf16>
    %cst_87 = arith.constant dense<0.000000e+00> : vector<8x128xf32>
    %258 = tpu.matmul %256, %257, %cst_87 {dimension_numbers = #tpu.dot_dimension_numbers<[1], [0], [0], [1], [0, 0, 1, 1], [], []>} : vector<8x32xbf16>, vector<32x128xbf16>, vector<8x128xf32> -> vector<8x128xf32>
    %259 = vector.extract_strided_slice %258 {offsets = [0, 0], sizes = [8, 64], strides = [1, 1]} : vector<8x128xf32> to vector<8x64xf32>
    %cst_88 = arith.constant 5.000000e-01 : f32
    %260 = vector.broadcast %cst_88 : f32 to vector<8x64xf32>
    %261 = arith.mulf %260, %259 : vector<8x64xf32>
    %262 = math.tanh %261 : vector<8x64xf32>
    %cst_89 = arith.constant 5.000000e-01 : f32
    %263 = vector.broadcast %cst_89 : f32 to vector<8x64xf32>
    %264 = arith.mulf %263, %262 : vector<8x64xf32>
    %cst_90 = arith.constant 5.000000e-01 : f32
    %265 = vector.broadcast %cst_90 : f32 to vector<8x64xf32>
    %266 = arith.addf %264, %265 : vector<8x64xf32>
    %267 = vector.extract_strided_slice %258 {offsets = [0, 64], sizes = [8, 32], strides = [1, 1]} : vector<8x128xf32> to vector<8x32xf32>
    %cst_91 = arith.constant 0.000000e+00 : f32
    %268 = vector.broadcast %cst_91 : f32 to vector<8x32xf32>
    %269 = arith.maximumf %267, %268 : vector<8x32xf32>
    %270 = vector.extract_strided_slice %266 {offsets = [0, 0], sizes = [8, 32], strides = [1, 1]} : vector<8x64xf32> to vector<8x32xf32>
    %271 = arith.subf %269, %239 : vector<8x32xf32>
    %272 = arith.mulf %270, %271 : vector<8x32xf32>
    %273 = arith.addf %239, %272 : vector<8x32xf32>
    %274 = vector.extract_strided_slice %258 {offsets = [0, 96], sizes = [8, 32], strides = [1, 1]} : vector<8x128xf32> to vector<8x32xf32>
    %cst_92 = arith.constant 5.000000e-01 : f32
    %275 = vector.broadcast %cst_92 : f32 to vector<8x32xf32>
    %276 = arith.mulf %275, %274 : vector<8x32xf32>
    %277 = math.tanh %276 : vector<8x32xf32>
    %cst_93 = arith.constant 5.000000e-01 : f32
    %278 = vector.broadcast %cst_93 : f32 to vector<8x32xf32>
    %279 = arith.mulf %278, %277 : vector<8x32xf32>
    %cst_94 = arith.constant 5.000000e-01 : f32
    %280 = vector.broadcast %cst_94 : f32 to vector<8x32xf32>
    %281 = arith.addf %279, %280 : vector<8x32xf32>
    %282 = vector.extract_strided_slice %266 {offsets = [0, 32], sizes = [8, 32], strides = [1, 1]} : vector<8x64xf32> to vector<8x32xf32>
    %283 = arith.subf %281, %239 : vector<8x32xf32>
    %284 = arith.mulf %282, %283 : vector<8x32xf32>
    %285 = arith.addf %239, %284 : vector<8x32xf32>
    %286 = arith.addf %194, %218 : vector<8x32xf32>
    %287 = arith.addf %286, %223 : vector<8x32xf32>
    %288 = arith.addf %287, %210 : vector<8x32xf32>
    %289 = arith.addf %288, %239 : vector<8x32xf32>
    %290 = arith.addf %289, %285 : vector<8x32xf32>
    %291 = arith.addf %290, %255 : vector<8x32xf32>
    %292 = arith.addf %291, %273 : vector<8x32xf32>
    %cst_95 = arith.constant 1.250000e-01 : f32
    %293 = vector.broadcast %cst_95 : f32 to vector<8x32xf32>
    %294 = arith.mulf %292, %293 : vector<8x32xf32>
    %c2_i32 = arith.constant 2 : i32
    %c8_i32_96 = arith.constant 8 : i32
    %295 = arith.muli %c2_i32, %c8_i32_96 : i32
    %296 = arith.index_cast %295 : i32 to index
    %c0_97 = arith.constant 0 : index
    %297 = vector.load %arg9[%296, %c0_97] : memref<32x64xf32, #tpu.memory_space<vmem>>, vector<8x64xf32>
    %298 = arith.truncf %294 : vector<8x32xf32> to vector<8x32xbf16>
    %c0_98 = arith.constant 0 : index
    %c0_99 = arith.constant 0 : index
    %299 = vector.load %arg3[%c0_98, %c0_99] : memref<32x64xbf16, #tpu.memory_space<vmem>>, vector<32x64xbf16>
    %cst_100 = arith.constant dense<0.000000e+00> : vector<8x64xf32>
    %300 = tpu.matmul %298, %299, %cst_100 {dimension_numbers = #tpu.dot_dimension_numbers<[1], [0], [0], [1], [0, 0, 1, 1], [], []>} : vector<8x32xbf16>, vector<32x64xbf16>, vector<8x64xf32> -> vector<8x64xf32>
    %301 = arith.addf %297, %300 : vector<8x64xf32>
    %302 = vector.extract_strided_slice %301 {offsets = [0, 0], sizes = [8, 32], strides = [1, 1]} : vector<8x64xf32> to vector<8x32xf32>
    %cst_101 = arith.constant 5.000000e-01 : f32
    %303 = vector.broadcast %cst_101 : f32 to vector<8x32xf32>
    %304 = arith.mulf %303, %302 : vector<8x32xf32>
    %305 = math.tanh %304 : vector<8x32xf32>
    %cst_102 = arith.constant 5.000000e-01 : f32
    %306 = vector.broadcast %cst_102 : f32 to vector<8x32xf32>
    %307 = arith.mulf %306, %305 : vector<8x32xf32>
    %cst_103 = arith.constant 5.000000e-01 : f32
    %308 = vector.broadcast %cst_103 : f32 to vector<8x32xf32>
    %309 = arith.addf %307, %308 : vector<8x32xf32>
    %310 = vector.extract_strided_slice %301 {offsets = [0, 32], sizes = [8, 32], strides = [1, 1]} : vector<8x64xf32> to vector<8x32xf32>
    %311 = math.tanh %310 : vector<8x32xf32>
    %312 = arith.subf %311, %294 : vector<8x32xf32>
    %313 = arith.mulf %309, %312 : vector<8x32xf32>
    %314 = arith.addf %294, %313 : vector<8x32xf32>
    %315 = arith.truncf %314 : vector<8x32xf32> to vector<8x32xbf16>
    %c0_104 = arith.constant 0 : index
    %c0_105 = arith.constant 0 : index
    %316 = vector.load %arg4[%c0_104, %c0_105] : memref<32x512xbf16, #tpu.memory_space<vmem>>, vector<32x64xbf16>
    %cst_106 = arith.constant dense<0.000000e+00> : vector<8x64xf32>
    %317 = tpu.matmul %315, %316, %cst_106 {dimension_numbers = #tpu.dot_dimension_numbers<[1], [0], [0], [1], [0, 0, 1, 1], [], []>} : vector<8x32xbf16>, vector<32x64xbf16>, vector<8x64xf32> -> vector<8x64xf32>
    %318 = vector.extract_strided_slice %317 {offsets = [0, 0], sizes = [8, 32], strides = [1, 1]} : vector<8x64xf32> to vector<8x32xf32>
    %cst_107 = arith.constant 5.000000e-01 : f32
    %319 = vector.broadcast %cst_107 : f32 to vector<8x32xf32>
    %320 = arith.mulf %319, %318 : vector<8x32xf32>
    %321 = math.tanh %320 : vector<8x32xf32>
    %cst_108 = arith.constant 5.000000e-01 : f32
    %322 = vector.broadcast %cst_108 : f32 to vector<8x32xf32>
    %323 = arith.mulf %322, %321 : vector<8x32xf32>
    %cst_109 = arith.constant 5.000000e-01 : f32
    %324 = vector.broadcast %cst_109 : f32 to vector<8x32xf32>
    %325 = arith.addf %323, %324 : vector<8x32xf32>
    %326 = vector.extract_strided_slice %317 {offsets = [0, 32], sizes = [8, 32], strides = [1, 1]} : vector<8x64xf32> to vector<8x32xf32>
    %cst_110 = arith.constant 5.000000e-01 : f32
    %327 = vector.broadcast %cst_110 : f32 to vector<8x32xf32>
    %328 = arith.mulf %327, %326 : vector<8x32xf32>
    %329 = math.tanh %328 : vector<8x32xf32>
    %cst_111 = arith.constant 5.000000e-01 : f32
    %330 = vector.broadcast %cst_111 : f32 to vector<8x32xf32>
    %331 = arith.mulf %330, %329 : vector<8x32xf32>
    %cst_112 = arith.constant 5.000000e-01 : f32
    %332 = vector.broadcast %cst_112 : f32 to vector<8x32xf32>
    %333 = arith.addf %331, %332 : vector<8x32xf32>
    %334 = arith.subf %333, %314 : vector<8x32xf32>
    %335 = arith.mulf %325, %334 : vector<8x32xf32>
    %336 = arith.addf %314, %335 : vector<8x32xf32>
    %337 = arith.truncf %336 : vector<8x32xf32> to vector<8x32xbf16>
    %c0_113 = arith.constant 0 : index
    %c64_114 = arith.constant 64 : index
    %338 = vector.load %arg4[%c0_113, %c64_114] : memref<32x512xbf16, #tpu.memory_space<vmem>>, vector<32x192xbf16>
    %cst_115 = arith.constant dense<0.000000e+00> : vector<8x192xf32>
    %339 = tpu.matmul %337, %338, %cst_115 {dimension_numbers = #tpu.dot_dimension_numbers<[1], [0], [0], [1], [0, 0, 1, 1], [], []>} : vector<8x32xbf16>, vector<32x192xbf16>, vector<8x192xf32> -> vector<8x192xf32>
    %340 = vector.extract_strided_slice %339 {offsets = [0, 0], sizes = [8, 96], strides = [1, 1]} : vector<8x192xf32> to vector<8x96xf32>
    %cst_116 = arith.constant 5.000000e-01 : f32
    %341 = vector.broadcast %cst_116 : f32 to vector<8x96xf32>
    %342 = arith.mulf %341, %340 : vector<8x96xf32>
    %343 = math.tanh %342 : vector<8x96xf32>
    %cst_117 = arith.constant 5.000000e-01 : f32
    %344 = vector.broadcast %cst_117 : f32 to vector<8x96xf32>
    %345 = arith.mulf %344, %343 : vector<8x96xf32>
    %cst_118 = arith.constant 5.000000e-01 : f32
    %346 = vector.broadcast %cst_118 : f32 to vector<8x96xf32>
    %347 = arith.addf %345, %346 : vector<8x96xf32>
    %348 = vector.extract_strided_slice %339 {offsets = [0, 96], sizes = [8, 32], strides = [1, 1]} : vector<8x192xf32> to vector<8x32xf32>
    %349 = vector.extract_strided_slice %347 {offsets = [0, 0], sizes = [8, 32], strides = [1, 1]} : vector<8x96xf32> to vector<8x32xf32>
    %350 = arith.subf %348, %336 : vector<8x32xf32>
    %351 = arith.mulf %349, %350 : vector<8x32xf32>
    %352 = arith.addf %336, %351 : vector<8x32xf32>
    %353 = vector.extract_strided_slice %339 {offsets = [0, 128], sizes = [8, 64], strides = [1, 1]} : vector<8x192xf32> to vector<8x64xf32>
    %cst_119 = arith.constant 0.000000e+00 : f32
    %354 = vector.broadcast %cst_119 : f32 to vector<8x64xf32>
    %355 = arith.maximumf %353, %354 : vector<8x64xf32>
    %356 = vector.extract_strided_slice %347 {offsets = [0, 32], sizes = [8, 32], strides = [1, 1]} : vector<8x96xf32> to vector<8x32xf32>
    %357 = vector.extract_strided_slice %355 {offsets = [0, 0], sizes = [8, 32], strides = [1, 1]} : vector<8x64xf32> to vector<8x32xf32>
    %358 = arith.subf %357, %336 : vector<8x32xf32>
    %359 = arith.mulf %356, %358 : vector<8x32xf32>
    %360 = arith.addf %336, %359 : vector<8x32xf32>
    %361 = vector.extract_strided_slice %347 {offsets = [0, 64], sizes = [8, 32], strides = [1, 1]} : vector<8x96xf32> to vector<8x32xf32>
    %362 = vector.extract_strided_slice %355 {offsets = [0, 32], sizes = [8, 32], strides = [1, 1]} : vector<8x64xf32> to vector<8x32xf32>
    %363 = arith.subf %362, %336 : vector<8x32xf32>
    %364 = arith.mulf %361, %363 : vector<8x32xf32>
    %365 = arith.addf %336, %364 : vector<8x32xf32>
    %366 = arith.truncf %360 : vector<8x32xf32> to vector<8x32xbf16>
    %c0_120 = arith.constant 0 : index
    %c256_121 = arith.constant 256 : index
    %367 = vector.load %arg4[%c0_120, %c256_121] : memref<32x512xbf16, #tpu.memory_space<vmem>>, vector<32x64xbf16>
    %cst_122 = arith.constant dense<0.000000e+00> : vector<8x64xf32>
    %368 = tpu.matmul %366, %367, %cst_122 {dimension_numbers = #tpu.dot_dimension_numbers<[1], [0], [0], [1], [0, 0, 1, 1], [], []>} : vector<8x32xbf16>, vector<32x64xbf16>, vector<8x64xf32> -> vector<8x64xf32>
    %369 = vector.extract_strided_slice %368 {offsets = [0, 0], sizes = [8, 32], strides = [1, 1]} : vector<8x64xf32> to vector<8x32xf32>
    %cst_123 = arith.constant 5.000000e-01 : f32
    %370 = vector.broadcast %cst_123 : f32 to vector<8x32xf32>
    %371 = arith.mulf %370, %369 : vector<8x32xf32>
    %372 = math.tanh %371 : vector<8x32xf32>
    %cst_124 = arith.constant 5.000000e-01 : f32
    %373 = vector.broadcast %cst_124 : f32 to vector<8x32xf32>
    %374 = arith.mulf %373, %372 : vector<8x32xf32>
    %cst_125 = arith.constant 5.000000e-01 : f32
    %375 = vector.broadcast %cst_125 : f32 to vector<8x32xf32>
    %376 = arith.addf %374, %375 : vector<8x32xf32>
    %377 = vector.extract_strided_slice %368 {offsets = [0, 32], sizes = [8, 32], strides = [1, 1]} : vector<8x64xf32> to vector<8x32xf32>
    %378 = math.tanh %377 : vector<8x32xf32>
    %379 = arith.subf %378, %360 : vector<8x32xf32>
    %380 = arith.mulf %376, %379 : vector<8x32xf32>
    %381 = arith.addf %360, %380 : vector<8x32xf32>
    %382 = arith.truncf %365 : vector<8x32xf32> to vector<8x32xbf16>
    %c0_126 = arith.constant 0 : index
    %c320_127 = arith.constant 320 : index
    %383 = vector.load %arg4[%c0_126, %c320_127] : memref<32x512xbf16, #tpu.memory_space<vmem>>, vector<32x64xbf16>
    %cst_128 = arith.constant dense<0.000000e+00> : vector<8x64xf32>
    %384 = tpu.matmul %382, %383, %cst_128 {dimension_numbers = #tpu.dot_dimension_numbers<[1], [0], [0], [1], [0, 0, 1, 1], [], []>} : vector<8x32xbf16>, vector<32x64xbf16>, vector<8x64xf32> -> vector<8x64xf32>
    %385 = vector.extract_strided_slice %384 {offsets = [0, 0], sizes = [8, 32], strides = [1, 1]} : vector<8x64xf32> to vector<8x32xf32>
    %cst_129 = arith.constant 5.000000e-01 : f32
    %386 = vector.broadcast %cst_129 : f32 to vector<8x32xf32>
    %387 = arith.mulf %386, %385 : vector<8x32xf32>
    %388 = math.tanh %387 : vector<8x32xf32>
    %cst_130 = arith.constant 5.000000e-01 : f32
    %389 = vector.broadcast %cst_130 : f32 to vector<8x32xf32>
    %390 = arith.mulf %389, %388 : vector<8x32xf32>
    %cst_131 = arith.constant 5.000000e-01 : f32
    %391 = vector.broadcast %cst_131 : f32 to vector<8x32xf32>
    %392 = arith.addf %390, %391 : vector<8x32xf32>
    %393 = vector.extract_strided_slice %384 {offsets = [0, 32], sizes = [8, 32], strides = [1, 1]} : vector<8x64xf32> to vector<8x32xf32>
    %394 = math.tanh %393 : vector<8x32xf32>
    %395 = arith.subf %394, %365 : vector<8x32xf32>
    %396 = arith.mulf %392, %395 : vector<8x32xf32>
    %397 = arith.addf %365, %396 : vector<8x32xf32>
    %398 = arith.truncf %381 : vector<8x32xf32> to vector<8x32xbf16>
    %c0_132 = arith.constant 0 : index
    %c384_133 = arith.constant 384 : index
    %399 = vector.load %arg4[%c0_132, %c384_133] : memref<32x512xbf16, #tpu.memory_space<vmem>>, vector<32x128xbf16>
    %cst_134 = arith.constant dense<0.000000e+00> : vector<8x128xf32>
    %400 = tpu.matmul %398, %399, %cst_134 {dimension_numbers = #tpu.dot_dimension_numbers<[1], [0], [0], [1], [0, 0, 1, 1], [], []>} : vector<8x32xbf16>, vector<32x128xbf16>, vector<8x128xf32> -> vector<8x128xf32>
    %401 = vector.extract_strided_slice %400 {offsets = [0, 0], sizes = [8, 64], strides = [1, 1]} : vector<8x128xf32> to vector<8x64xf32>
    %cst_135 = arith.constant 5.000000e-01 : f32
    %402 = vector.broadcast %cst_135 : f32 to vector<8x64xf32>
    %403 = arith.mulf %402, %401 : vector<8x64xf32>
    %404 = math.tanh %403 : vector<8x64xf32>
    %cst_136 = arith.constant 5.000000e-01 : f32
    %405 = vector.broadcast %cst_136 : f32 to vector<8x64xf32>
    %406 = arith.mulf %405, %404 : vector<8x64xf32>
    %cst_137 = arith.constant 5.000000e-01 : f32
    %407 = vector.broadcast %cst_137 : f32 to vector<8x64xf32>
    %408 = arith.addf %406, %407 : vector<8x64xf32>
    %409 = vector.extract_strided_slice %400 {offsets = [0, 64], sizes = [8, 32], strides = [1, 1]} : vector<8x128xf32> to vector<8x32xf32>
    %cst_138 = arith.constant 0.000000e+00 : f32
    %410 = vector.broadcast %cst_138 : f32 to vector<8x32xf32>
    %411 = arith.maximumf %409, %410 : vector<8x32xf32>
    %412 = vector.extract_strided_slice %408 {offsets = [0, 0], sizes = [8, 32], strides = [1, 1]} : vector<8x64xf32> to vector<8x32xf32>
    %413 = arith.subf %411, %381 : vector<8x32xf32>
    %414 = arith.mulf %412, %413 : vector<8x32xf32>
    %415 = arith.addf %381, %414 : vector<8x32xf32>
    %416 = vector.extract_strided_slice %400 {offsets = [0, 96], sizes = [8, 32], strides = [1, 1]} : vector<8x128xf32> to vector<8x32xf32>
    %cst_139 = arith.constant 5.000000e-01 : f32
    %417 = vector.broadcast %cst_139 : f32 to vector<8x32xf32>
    %418 = arith.mulf %417, %416 : vector<8x32xf32>
    %419 = math.tanh %418 : vector<8x32xf32>
    %cst_140 = arith.constant 5.000000e-01 : f32
    %420 = vector.broadcast %cst_140 : f32 to vector<8x32xf32>
    %421 = arith.mulf %420, %419 : vector<8x32xf32>
    %cst_141 = arith.constant 5.000000e-01 : f32
    %422 = vector.broadcast %cst_141 : f32 to vector<8x32xf32>
    %423 = arith.addf %421, %422 : vector<8x32xf32>
    %424 = vector.extract_strided_slice %408 {offsets = [0, 32], sizes = [8, 32], strides = [1, 1]} : vector<8x64xf32> to vector<8x32xf32>
    %425 = arith.subf %423, %381 : vector<8x32xf32>
    %426 = arith.mulf %424, %425 : vector<8x32xf32>
    %427 = arith.addf %381, %426 : vector<8x32xf32>
    %428 = arith.addf %336, %360 : vector<8x32xf32>
    %429 = arith.addf %428, %365 : vector<8x32xf32>
    %430 = arith.addf %429, %352 : vector<8x32xf32>
    %431 = arith.addf %430, %381 : vector<8x32xf32>
    %432 = arith.addf %431, %427 : vector<8x32xf32>
    %433 = arith.addf %432, %397 : vector<8x32xf32>
    %434 = arith.addf %433, %415 : vector<8x32xf32>
    %cst_142 = arith.constant 1.250000e-01 : f32
    %435 = vector.broadcast %cst_142 : f32 to vector<8x32xf32>
    %436 = arith.mulf %434, %435 : vector<8x32xf32>
    %c3_i32 = arith.constant 3 : i32
    %c8_i32_143 = arith.constant 8 : i32
    %437 = arith.muli %c3_i32, %c8_i32_143 : i32
    %438 = arith.index_cast %437 : i32 to index
    %c0_144 = arith.constant 0 : index
    %439 = vector.load %arg9[%438, %c0_144] : memref<32x64xf32, #tpu.memory_space<vmem>>, vector<8x64xf32>
    %440 = arith.truncf %436 : vector<8x32xf32> to vector<8x32xbf16>
    %c0_145 = arith.constant 0 : index
    %c0_146 = arith.constant 0 : index
    %441 = vector.load %arg3[%c0_145, %c0_146] : memref<32x64xbf16, #tpu.memory_space<vmem>>, vector<32x64xbf16>
    %cst_147 = arith.constant dense<0.000000e+00> : vector<8x64xf32>
    %442 = tpu.matmul %440, %441, %cst_147 {dimension_numbers = #tpu.dot_dimension_numbers<[1], [0], [0], [1], [0, 0, 1, 1], [], []>} : vector<8x32xbf16>, vector<32x64xbf16>, vector<8x64xf32> -> vector<8x64xf32>
    %443 = arith.addf %439, %442 : vector<8x64xf32>
    %444 = vector.extract_strided_slice %443 {offsets = [0, 0], sizes = [8, 32], strides = [1, 1]} : vector<8x64xf32> to vector<8x32xf32>
    %cst_148 = arith.constant 5.000000e-01 : f32
    %445 = vector.broadcast %cst_148 : f32 to vector<8x32xf32>
    %446 = arith.mulf %445, %444 : vector<8x32xf32>
    %447 = math.tanh %446 : vector<8x32xf32>
    %cst_149 = arith.constant 5.000000e-01 : f32
    %448 = vector.broadcast %cst_149 : f32 to vector<8x32xf32>
    %449 = arith.mulf %448, %447 : vector<8x32xf32>
    %cst_150 = arith.constant 5.000000e-01 : f32
    %450 = vector.broadcast %cst_150 : f32 to vector<8x32xf32>
    %451 = arith.addf %449, %450 : vector<8x32xf32>
    %452 = vector.extract_strided_slice %443 {offsets = [0, 32], sizes = [8, 32], strides = [1, 1]} : vector<8x64xf32> to vector<8x32xf32>
    %453 = math.tanh %452 : vector<8x32xf32>
    %454 = arith.subf %453, %436 : vector<8x32xf32>
    %455 = arith.mulf %451, %454 : vector<8x32xf32>
    %456 = arith.addf %436, %455 : vector<8x32xf32>
    %457 = arith.truncf %456 : vector<8x32xf32> to vector<8x32xbf16>
    %c0_151 = arith.constant 0 : index
    %c0_152 = arith.constant 0 : index
    %458 = vector.load %arg4[%c0_151, %c0_152] : memref<32x512xbf16, #tpu.memory_space<vmem>>, vector<32x64xbf16>
    %cst_153 = arith.constant dense<0.000000e+00> : vector<8x64xf32>
    %459 = tpu.matmul %457, %458, %cst_153 {dimension_numbers = #tpu.dot_dimension_numbers<[1], [0], [0], [1], [0, 0, 1, 1], [], []>} : vector<8x32xbf16>, vector<32x64xbf16>, vector<8x64xf32> -> vector<8x64xf32>
    %460 = vector.extract_strided_slice %459 {offsets = [0, 0], sizes = [8, 32], strides = [1, 1]} : vector<8x64xf32> to vector<8x32xf32>
    %cst_154 = arith.constant 5.000000e-01 : f32
    %461 = vector.broadcast %cst_154 : f32 to vector<8x32xf32>
    %462 = arith.mulf %461, %460 : vector<8x32xf32>
    %463 = math.tanh %462 : vector<8x32xf32>
    %cst_155 = arith.constant 5.000000e-01 : f32
    %464 = vector.broadcast %cst_155 : f32 to vector<8x32xf32>
    %465 = arith.mulf %464, %463 : vector<8x32xf32>
    %cst_156 = arith.constant 5.000000e-01 : f32
    %466 = vector.broadcast %cst_156 : f32 to vector<8x32xf32>
    %467 = arith.addf %465, %466 : vector<8x32xf32>
    %468 = vector.extract_strided_slice %459 {offsets = [0, 32], sizes = [8, 32], strides = [1, 1]} : vector<8x64xf32> to vector<8x32xf32>
    %cst_157 = arith.constant 5.000000e-01 : f32
    %469 = vector.broadcast %cst_157 : f32 to vector<8x32xf32>
    %470 = arith.mulf %469, %468 : vector<8x32xf32>
    %471 = math.tanh %470 : vector<8x32xf32>
    %cst_158 = arith.constant 5.000000e-01 : f32
    %472 = vector.broadcast %cst_158 : f32 to vector<8x32xf32>
    %473 = arith.mulf %472, %471 : vector<8x32xf32>
    %cst_159 = arith.constant 5.000000e-01 : f32
    %474 = vector.broadcast %cst_159 : f32 to vector<8x32xf32>
    %475 = arith.addf %473, %474 : vector<8x32xf32>
    %476 = arith.subf %475, %456 : vector<8x32xf32>
    %477 = arith.mulf %467, %476 : vector<8x32xf32>
    %478 = arith.addf %456, %477 : vector<8x32xf32>
    %479 = arith.truncf %478 : vector<8x32xf32> to vector<8x32xbf16>
    %c0_160 = arith.constant 0 : index
    %c64_161 = arith.constant 64 : index
    %480 = vector.load %arg4[%c0_160, %c64_161] : memref<32x512xbf16, #tpu.memory_space<vmem>>, vector<32x192xbf16>
    %cst_162 = arith.constant dense<0.000000e+00> : vector<8x192xf32>
    %481 = tpu.matmul %479, %480, %cst_162 {dimension_numbers = #tpu.dot_dimension_numbers<[1], [0], [0], [1], [0, 0, 1, 1], [], []>} : vector<8x32xbf16>, vector<32x192xbf16>, vector<8x192xf32> -> vector<8x192xf32>
    %482 = vector.extract_strided_slice %481 {offsets = [0, 0], sizes = [8, 96], strides = [1, 1]} : vector<8x192xf32> to vector<8x96xf32>
    %cst_163 = arith.constant 5.000000e-01 : f32
    %483 = vector.broadcast %cst_163 : f32 to vector<8x96xf32>
    %484 = arith.mulf %483, %482 : vector<8x96xf32>
    %485 = math.tanh %484 : vector<8x96xf32>
    %cst_164 = arith.constant 5.000000e-01 : f32
    %486 = vector.broadcast %cst_164 : f32 to vector<8x96xf32>
    %487 = arith.mulf %486, %485 : vector<8x96xf32>
    %cst_165 = arith.constant 5.000000e-01 : f32
    %488 = vector.broadcast %cst_165 : f32 to vector<8x96xf32>
    %489 = arith.addf %487, %488 : vector<8x96xf32>
    %490 = vector.extract_strided_slice %481 {offsets = [0, 96], sizes = [8, 32], strides = [1, 1]} : vector<8x192xf32> to vector<8x32xf32>
    %491 = vector.extract_strided_slice %489 {offsets = [0, 0], sizes = [8, 32], strides = [1, 1]} : vector<8x96xf32> to vector<8x32xf32>
    %492 = arith.subf %490, %478 : vector<8x32xf32>
    %493 = arith.mulf %491, %492 : vector<8x32xf32>
    %494 = arith.addf %478, %493 : vector<8x32xf32>
    %495 = vector.extract_strided_slice %481 {offsets = [0, 128], sizes = [8, 64], strides = [1, 1]} : vector<8x192xf32> to vector<8x64xf32>
    %cst_166 = arith.constant 0.000000e+00 : f32
    %496 = vector.broadcast %cst_166 : f32 to vector<8x64xf32>
    %497 = arith.maximumf %495, %496 : vector<8x64xf32>
    %498 = vector.extract_strided_slice %489 {offsets = [0, 32], sizes = [8, 32], strides = [1, 1]} : vector<8x96xf32> to vector<8x32xf32>
    %499 = vector.extract_strided_slice %497 {offsets = [0, 0], sizes = [8, 32], strides = [1, 1]} : vector<8x64xf32> to vector<8x32xf32>
    %500 = arith.subf %499, %478 : vector<8x32xf32>
    %501 = arith.mulf %498, %500 : vector<8x32xf32>
    %502 = arith.addf %478, %501 : vector<8x32xf32>
    %503 = vector.extract_strided_slice %489 {offsets = [0, 64], sizes = [8, 32], strides = [1, 1]} : vector<8x96xf32> to vector<8x32xf32>
    %504 = vector.extract_strided_slice %497 {offsets = [0, 32], sizes = [8, 32], strides = [1, 1]} : vector<8x64xf32> to vector<8x32xf32>
    %505 = arith.subf %504, %478 : vector<8x32xf32>
    %506 = arith.mulf %503, %505 : vector<8x32xf32>
    %507 = arith.addf %478, %506 : vector<8x32xf32>
    %508 = arith.truncf %502 : vector<8x32xf32> to vector<8x32xbf16>
    %c0_167 = arith.constant 0 : index
    %c256_168 = arith.constant 256 : index
    %509 = vector.load %arg4[%c0_167, %c256_168] : memref<32x512xbf16, #tpu.memory_space<vmem>>, vector<32x64xbf16>
    %cst_169 = arith.constant dense<0.000000e+00> : vector<8x64xf32>
    %510 = tpu.matmul %508, %509, %cst_169 {dimension_numbers = #tpu.dot_dimension_numbers<[1], [0], [0], [1], [0, 0, 1, 1], [], []>} : vector<8x32xbf16>, vector<32x64xbf16>, vector<8x64xf32> -> vector<8x64xf32>
    %511 = vector.extract_strided_slice %510 {offsets = [0, 0], sizes = [8, 32], strides = [1, 1]} : vector<8x64xf32> to vector<8x32xf32>
    %cst_170 = arith.constant 5.000000e-01 : f32
    %512 = vector.broadcast %cst_170 : f32 to vector<8x32xf32>
    %513 = arith.mulf %512, %511 : vector<8x32xf32>
    %514 = math.tanh %513 : vector<8x32xf32>
    %cst_171 = arith.constant 5.000000e-01 : f32
    %515 = vector.broadcast %cst_171 : f32 to vector<8x32xf32>
    %516 = arith.mulf %515, %514 : vector<8x32xf32>
    %cst_172 = arith.constant 5.000000e-01 : f32
    %517 = vector.broadcast %cst_172 : f32 to vector<8x32xf32>
    %518 = arith.addf %516, %517 : vector<8x32xf32>
    %519 = vector.extract_strided_slice %510 {offsets = [0, 32], sizes = [8, 32], strides = [1, 1]} : vector<8x64xf32> to vector<8x32xf32>
    %520 = math.tanh %519 : vector<8x32xf32>
    %521 = arith.subf %520, %502 : vector<8x32xf32>
    %522 = arith.mulf %518, %521 : vector<8x32xf32>
    %523 = arith.addf %502, %522 : vector<8x32xf32>
    %524 = arith.truncf %507 : vector<8x32xf32> to vector<8x32xbf16>
    %c0_173 = arith.constant 0 : index
    %c320_174 = arith.constant 320 : index
    %525 = vector.load %arg4[%c0_173, %c320_174] : memref<32x512xbf16, #tpu.memory_space<vmem>>, vector<32x64xbf16>
    %cst_175 = arith.constant dense<0.000000e+00> : vector<8x64xf32>
    %526 = tpu.matmul %524, %525, %cst_175 {dimension_numbers = #tpu.dot_dimension_numbers<[1], [0], [0], [1], [0, 0, 1, 1], [], []>} : vector<8x32xbf16>, vector<32x64xbf16>, vector<8x64xf32> -> vector<8x64xf32>
    %527 = vector.extract_strided_slice %526 {offsets = [0, 0], sizes = [8, 32], strides = [1, 1]} : vector<8x64xf32> to vector<8x32xf32>
    %cst_176 = arith.constant 5.000000e-01 : f32
    %528 = vector.broadcast %cst_176 : f32 to vector<8x32xf32>
    %529 = arith.mulf %528, %527 : vector<8x32xf32>
    %530 = math.tanh %529 : vector<8x32xf32>
    %cst_177 = arith.constant 5.000000e-01 : f32
    %531 = vector.broadcast %cst_177 : f32 to vector<8x32xf32>
    %532 = arith.mulf %531, %530 : vector<8x32xf32>
    %cst_178 = arith.constant 5.000000e-01 : f32
    %533 = vector.broadcast %cst_178 : f32 to vector<8x32xf32>
    %534 = arith.addf %532, %533 : vector<8x32xf32>
    %535 = vector.extract_strided_slice %526 {offsets = [0, 32], sizes = [8, 32], strides = [1, 1]} : vector<8x64xf32> to vector<8x32xf32>
    %536 = math.tanh %535 : vector<8x32xf32>
    %537 = arith.subf %536, %507 : vector<8x32xf32>
    %538 = arith.mulf %534, %537 : vector<8x32xf32>
    %539 = arith.addf %507, %538 : vector<8x32xf32>
    %540 = arith.truncf %523 : vector<8x32xf32> to vector<8x32xbf16>
    %c0_179 = arith.constant 0 : index
    %c384_180 = arith.constant 384 : index
    %541 = vector.load %arg4[%c0_179, %c384_180] : memref<32x512xbf16, #tpu.memory_space<vmem>>, vector<32x128xbf16>
    %cst_181 = arith.constant dense<0.000000e+00> : vector<8x128xf32>
    %542 = tpu.matmul %540, %541, %cst_181 {dimension_numbers = #tpu.dot_dimension_numbers<[1], [0], [0], [1], [0, 0, 1, 1], [], []>} : vector<8x32xbf16>, vector<32x128xbf16>, vector<8x128xf32> -> vector<8x128xf32>
    %543 = vector.extract_strided_slice %542 {offsets = [0, 0], sizes = [8, 64], strides = [1, 1]} : vector<8x128xf32> to vector<8x64xf32>
    %cst_182 = arith.constant 5.000000e-01 : f32
    %544 = vector.broadcast %cst_182 : f32 to vector<8x64xf32>
    %545 = arith.mulf %544, %543 : vector<8x64xf32>
    %546 = math.tanh %545 : vector<8x64xf32>
    %cst_183 = arith.constant 5.000000e-01 : f32
    %547 = vector.broadcast %cst_183 : f32 to vector<8x64xf32>
    %548 = arith.mulf %547, %546 : vector<8x64xf32>
    %cst_184 = arith.constant 5.000000e-01 : f32
    %549 = vector.broadcast %cst_184 : f32 to vector<8x64xf32>
    %550 = arith.addf %548, %549 : vector<8x64xf32>
    %551 = vector.extract_strided_slice %542 {offsets = [0, 64], sizes = [8, 32], strides = [1, 1]} : vector<8x128xf32> to vector<8x32xf32>
    %cst_185 = arith.constant 0.000000e+00 : f32
    %552 = vector.broadcast %cst_185 : f32 to vector<8x32xf32>
    %553 = arith.maximumf %551, %552 : vector<8x32xf32>
    %554 = vector.extract_strided_slice %550 {offsets = [0, 0], sizes = [8, 32], strides = [1, 1]} : vector<8x64xf32> to vector<8x32xf32>
    %555 = arith.subf %553, %523 : vector<8x32xf32>
    %556 = arith.mulf %554, %555 : vector<8x32xf32>
    %557 = arith.addf %523, %556 : vector<8x32xf32>
    %558 = vector.extract_strided_slice %542 {offsets = [0, 96], sizes = [8, 32], strides = [1, 1]} : vector<8x128xf32> to vector<8x32xf32>
    %cst_186 = arith.constant 5.000000e-01 : f32
    %559 = vector.broadcast %cst_186 : f32 to vector<8x32xf32>
    %560 = arith.mulf %559, %558 : vector<8x32xf32>
    %561 = math.tanh %560 : vector<8x32xf32>
    %cst_187 = arith.constant 5.000000e-01 : f32
    %562 = vector.broadcast %cst_187 : f32 to vector<8x32xf32>
    %563 = arith.mulf %562, %561 : vector<8x32xf32>
    %cst_188 = arith.constant 5.000000e-01 : f32
    %564 = vector.broadcast %cst_188 : f32 to vector<8x32xf32>
    %565 = arith.addf %563, %564 : vector<8x32xf32>
    %566 = vector.extract_strided_slice %550 {offsets = [0, 32], sizes = [8, 32], strides = [1, 1]} : vector<8x64xf32> to vector<8x32xf32>
    %567 = arith.subf %565, %523 : vector<8x32xf32>
    %568 = arith.mulf %566, %567 : vector<8x32xf32>
    %569 = arith.addf %523, %568 : vector<8x32xf32>
    %570 = arith.addf %478, %502 : vector<8x32xf32>
    %571 = arith.addf %570, %507 : vector<8x32xf32>
    %572 = arith.addf %571, %494 : vector<8x32xf32>
    %573 = arith.addf %572, %523 : vector<8x32xf32>
    %574 = arith.addf %573, %569 : vector<8x32xf32>
    %575 = arith.addf %574, %539 : vector<8x32xf32>
    %576 = arith.addf %575, %557 : vector<8x32xf32>
    %cst_189 = arith.constant 1.250000e-01 : f32
    %577 = vector.broadcast %cst_189 : f32 to vector<8x32xf32>
    %578 = arith.mulf %576, %577 : vector<8x32xf32>
    %c4_i32 = arith.constant 4 : i32
    %579 = arith.truncf %578 : vector<8x32xf32> to vector<8x32xbf16>
    %c0_190 = arith.constant 0 : index
    %c0_191 = arith.constant 0 : index
    %580 = vector.load %arg5[%c0_190, %c0_191] : memref<32x4xbf16, #tpu.memory_space<vmem>>, vector<32x4xbf16>
    %cst_192 = arith.constant dense<0.000000e+00> : vector<8x4xf32>
    %581 = tpu.matmul %579, %580, %cst_192 {dimension_numbers = #tpu.dot_dimension_numbers<[1], [0], [0], [1], [0, 0, 1, 1], [], []>} : vector<8x32xbf16>, vector<32x4xbf16>, vector<8x4xf32> -> vector<8x4xf32>
    %c0_193 = arith.constant 0 : index
    %c0_194 = arith.constant 0 : index
    %582 = vector.load %arg6[%c0_193, %c0_194] : memref<1x4xf32, #tpu.memory_space<vmem>>, vector<1x4xf32>
    %583 = vector.broadcast %582 : vector<1x4xf32> to vector<8x4xf32>
    %584 = arith.addf %581, %583 : vector<8x4xf32>
    %c0_195 = arith.constant 0 : index
    %c0_196 = arith.constant 0 : index
    %585 = vector.load %arg7[%c0_195, %c0_196] : memref<8x4xf32, #tpu.memory_space<vmem>>, vector<8x4xf32>
    tpu.vector_store %arg7[%c0_195, %c0_196], %584 {strides = array<i32>} : memref<8x4xf32, #tpu.memory_space<vmem>>, vector<8x4xf32>,
    %cst_197 = arith.constant dense<0xFF800000> : vector<8xf32>
    %586 = vector.multi_reduction <maximumf>, %584, %cst_197 [1] : vector<8x4xf32> to vector<8xf32>
    %587 = vector.shape_cast %586 : vector<8xf32> to vector<8x1xf32>
    %588 = vector.broadcast %587 : vector<8x1xf32> to vector<8x4xf32>
    %589 = arith.subf %584, %588 : vector<8x4xf32>
    %590 = math.exp %589 : vector<8x4xf32>
    %cst_198 = arith.constant dense<0.000000e+00> : vector<8xf32>
    %591 = vector.multi_reduction <add>, %590, %cst_198 [1] : vector<8x4xf32> to vector<8xf32>
    %592 = vector.shape_cast %591 : vector<8xf32> to vector<8x1xf32>
    %593 = tpu.reciprocal %592 {approx = true} : vector<8x1xf32> -> vector<8x1xf32>
    %594 = vector.broadcast %593 : vector<8x1xf32> to vector<8x4xf32>
    %595 = arith.mulf %590, %594 : vector<8x4xf32>
    %c0_199 = arith.constant 0 : index
    %c0_200 = arith.constant 0 : index
    %596 = vector.load %arg8[%c0_199, %c0_200] : memref<8x4xf32, #tpu.memory_space<vmem>>, vector<8x4xf32>
    tpu.vector_store %arg8[%c0_199, %c0_200], %595 {strides = array<i32>} : memref<8x4xf32, #tpu.memory_space<vmem>>, vector<8x4xf32>,
    return
  }
}

</mosaic_0001>

<llo_original>
// kernel: rnn_model_forward.1
$region0: #{rnn_model_forward.1}
  #allocation0 [shape = 'u32[]', space=smem, size = 0x4, offset = 0x4, fixed_abs, tag = 'smem constant byte address 0x4 - core index']
  #allocation1 [shape = 'u32[144,128]{1,0:T(1,128)}', space=vmem, size = 0x12000, scoped, tag = 'internal scratch']
  #allocation2 [shape = 'f32[32,64]{1,0:T(8,128)}', space=vmem, size = 0x4000, scoped, tag = 'scratch operand']
  %s0 = inlined_call_operand.vmem [shape: s32[32,1], index: 0, kind: input, shape index: {}]
  %s1 = inlined_call_operand.hbm [shape: f32[8,32], index: 1, kind: input, shape index: {}]
  %s2 = inlined_call_operand.hbm [shape: bf16[56,64], index: 2, kind: input, shape index: {}]
  %s3 = inlined_call_operand.vmem [shape: bf16[32,64], index: 3, kind: input, shape index: {}]
  %s4 = inlined_call_operand.vmem [shape: bf16[32,512], index: 4, kind: input, shape index: {}]
  %s5 = inlined_call_operand.vmem [shape: bf16[32,4], index: 5, kind: input, shape index: {}]
  %s6 = inlined_call_operand.hbm [shape: f32[1,4], index: 6, kind: input, shape index: {}]
  %s7 = inlined_call_operand.vmem [shape: f32[8,4], index: 7, kind: output, shape index: {0}]
  %s8 = inlined_call_operand.vmem [shape: f32[8,4], index: 8, kind: output, shape index: {1}]
  %9 = xla_tuple %s7, %s8
  %s10 = sld [smem:[#allocation0]]
  $region58: #{rnn_model_forward.1} parent=0
    _
  %s12 = ssub.s32 1, %s10
  %s13 = scalar_select 0, %s12, %s10
  $region1: #{rnn_model_forward.1} parent=0
    #allocation3 [shape = 'u8[4096]{0}', space=vmem, size = 0x1000, scoped, tag = 'input window, operand 1, single buffered']
    #allocation4 [shape = 's32[1]{0}', space=sflag, size = 0x4, scoped, tag = 'scoped memory for rnn_model_forward.1']
    #allocation5 [shape = 'u8[14336]{0}', space=vmem, size = 0x3800, scoped, tag = 'input window, operand 2, single buffered']
    #allocation6 [shape = 's32[1]{0}', space=sflag, size = 0x4, scoped, tag = 'scoped memory for rnn_model_forward.1']
    #allocation7 [shape = 'u8[512]{0}', space=vmem, size = 0x400, scoped, tag = 'input window, operand 6, single buffered']
    %14 = vsyncpa [#allocation4], 0
    %15 = vsyncpa [#allocation6], 0
    // Predicated region
    $region2: #{rnn_model_forward.1} parent=1 // pred_check
      _
    $region3: #{rnn_model_forward.1} parent=1 // pred_check_branch
      %17 = sbr.rel (0) target = $region5
    $region4: #{rnn_model_forward.1} parent=1 // pred_region
      _
    $region5: #{rnn_model_forward.1} parent=1 // pred_fallthru
      _
    // Predicated region
    $region6: #{rnn_model_forward.1} parent=1 // pred_check
      _
    $region7: #{rnn_model_forward.1} parent=1 // pred_check_branch
      %19 = sbr.rel (0) target = $region9
    $region8: #{rnn_model_forward.1} parent=1 // pred_region
      %s21 = ssub.s32 128, 128
      %22 = vsyncadd [#allocation4], %s21
      %s24 = sshll.u32 [#allocation3], 4
      %s25 = int_to_ptr.vmem [resolvable:$true] %s24
      %27 = dma.hbm_to_vmem [thread:$0]  %s1, 128, %s25, [#allocation4]
    $region9: #{rnn_model_forward.1} parent=1 // pred_fallthru
      _
    // Predicated region
    $region10: #{rnn_model_forward.1} parent=1 // pred_check
      _
    $region11: #{rnn_model_forward.1} parent=1 // pred_check_branch
      %29 = sbr.rel (0) target = $region13
    $region12: #{rnn_model_forward.1} parent=1 // pred_region
      %s31 = ssub.s32 448, 448
      %32 = vsyncadd [#allocation6], %s31
      %s33 = sshll.u32 [#allocation5], 4
      %s34 = int_to_ptr.vmem [resolvable:$true] %s33
      %39 = dma.hbm_to_vmem [thread:$0]  %s2, 448, %s34, [#allocation6], 64, 64, 4
    $region13: #{rnn_model_forward.1} parent=1 // pred_fallthru
      _
    // Predicated region
    $region14: #{rnn_model_forward.1} parent=1 // pred_check
      _
    $region15: #{rnn_model_forward.1} parent=1 // pred_check_branch
      %41 = sbr.rel (0) target = $region17
    $region16: #{rnn_model_forward.1} parent=1 // pred_region
      _
    $region17: #{rnn_model_forward.1} parent=1 // pred_fallthru
      _
    // Predicated region
    $region18: #{rnn_model_forward.1} parent=1 // pred_check
      _
    $region19: #{rnn_model_forward.1} parent=1 // pred_check_branch
      %43 = sbr.rel (0) target = $region21
    $region20: #{rnn_model_forward.1} parent=1 // pred_region
      _
    $region21: #{rnn_model_forward.1} parent=1 // pred_fallthru
      _
    // Predicated region
    $region22: #{rnn_model_forward.1} parent=1 // pred_check
      _
    $region23: #{rnn_model_forward.1} parent=1 // pred_check_branch
      %45 = sbr.rel (0) target = $region25
    $region24: #{rnn_model_forward.1} parent=1 // pred_region
      _
    $region25: #{rnn_model_forward.1} parent=1 // pred_fallthru
      _
    // Predicated region
    $region26: #{rnn_model_forward.1} parent=1 // pred_check
      _
    $region27: #{rnn_model_forward.1} parent=1 // pred_check_branch
      %47 = sbr.rel (0) target = $region29
    $region28: #{rnn_model_forward.1} parent=1 // pred_region
      %s49 = ssub.s32 16, 16
      %50 = vsyncadd [#allocation6], %s49
      %s52 = sshll.u32 [#allocation7], 4
      %s53 = int_to_ptr.vmem [resolvable:$true] %s52
      %55 = dma.hbm_to_vmem [thread:$0]  %s6, 16, %s53, [#allocation6]
    $region29: #{rnn_model_forward.1} parent=1 // pred_fallthru
      _
    // Predicated region
    $region30: #{rnn_model_forward.1} parent=1 // pred_check
      _
    $region31: #{rnn_model_forward.1} parent=1 // pred_check_branch
      %57 = sbr.rel (0) target = $region33
    $region32: #{rnn_model_forward.1} parent=1 // pred_region
      %58 = dma.done [#allocation4], 128
    $region33: #{rnn_model_forward.1} parent=1 // pred_fallthru
      _
    // Predicated region
    $region34: #{rnn_model_forward.1} parent=1 // pred_check
      _
    $region35: #{rnn_model_forward.1} parent=1 // pred_check_branch
      %60 = sbr.rel (0) target = $region37
    $region36: #{rnn_model_forward.1} parent=1 // pred_region
      %61 = dma.done [#allocation6], 448
    $region37: #{rnn_model_forward.1} parent=1 // pred_fallthru
      _
    // Predicated region
    $region38: #{rnn_model_forward.1} parent=1 // pred_check
      _
    $region39: #{rnn_model_forward.1} parent=1 // pred_check_branch
      %63 = sbr.rel (0) target = $region41
    $region40: #{rnn_model_forward.1} parent=1 // pred_region
      %64 = dma.done [#allocation6], 16
    $region41: #{rnn_model_forward.1} parent=1 // pred_fallthru
      _
    %v66 = vld [vmem:[%s0] sm:$0xff]
    %v67 = vld [vmem:[%s0 + $0x8] sm:$0xff]
    %v68 = vld [vmem:[%s0 + $0x10] sm:$0xff]
    %v69 = vld [vmem:[%s0 + $0x18] sm:$0xff]
    %v70 = vlaneseq
    %v71 = vand.u32 %v70, 127
    %72 = vset.pattern.permute.xlu0 0
    %73 = vperm.xlu0 %72, %v66
    %v74 = vpop.permute.xlu0 %73
    %75 = vset.pattern.permute.xlu0 0
    %76 = vperm.xlu0 %75, %v67
    %v77 = vpop.permute.xlu0 %76
    %78 = vset.pattern.permute.xlu0 0
    %79 = vperm.xlu0 %78, %v68
    %v80 = vpop.permute.xlu0 %79
    %81 = vset.pattern.permute.xlu0 0
    %82 = vperm.xlu0 %81, %v69
    %v83 = vpop.permute.xlu0 %82
    %vm84 = vcmp.eq.s32.totalorder %v74, %v71
    %vm85 = vcmp.eq.s32.totalorder %v77, %v71
    %vm86 = vcmp.eq.s32.totalorder %v80, %v71
    %vm87 = vcmp.eq.s32.totalorder %v83, %v71
    %v88 = vsel %vm84, 1, 0
    %v89 = vsel %vm85, 1, 0
    %v90 = vsel %vm86, 1, 0
    %v91 = vsel %vm87, 1, 0
    %v92 = vcvt.s32.f32 %v88
    %v93 = vcvt.s32.f32 %v89
    %v94 = vcvt.s32.f32 %v90
    %v95 = vcvt.s32.f32 %v91
    %v96 = vpack.c.bf16 %v93, %v92
    %v97 = vpack.c.bf16 %v95, %v94
    %v98 = vld [vmem:[#allocation5] sm:$0xf]
    %v99 = vld [vmem:[#allocation5 + $0x4] sm:$0xf]
    %v100 = vld [vmem:[#allocation5 + $0x8] sm:$0xf]
    %v101 = vld [vmem:[#allocation5 + $0xc] sm:$0xf]
    %v102 = vld [vmem:[#allocation5 + $0x10] sm:$0xf]
    %v103 = vld [vmem:[#allocation5 + $0x14] sm:$0xf]
    %v104 = vld [vmem:[#allocation5 + $0x18] sm:$0xf]
    %v112 = vunpack.c.l.b16 %v98
    %v113 = vunpack.c.l.b16 %v99
    %v114 = vunpack.c.l.b16 %v100
    %v115 = vunpack.c.l.b16 %v101
    %v116 = vunpack.c.l.b16 %v102
    %v117 = vunpack.c.l.b16 %v103
    %v118 = vunpack.c.l.b16 %v104
    %v119 = vpack.c.b16 %v113, %v112
    %v120 = vpack.c.b16 %v115, %v114
    %v121 = vpack.c.b16 %v117, %v116
    %v122 = vpack.c.b16 %v118, %v118
    %vm126 = vcmask 457728
    %v128 = vsel %vm126, %v96, 0
    %v131 = vsel %vm126, %v97, 0
    %vm133 = vcmask 1043456
    %v135 = vsel %vm133, %v122, 0
    %137 = vmatprep.subr.bf16.mxu0 0
    %138 = vmatpush1.bf16.msra.mxu0 %v119
    %139 = vmatprep.subr.bf16.mxu0 0
    %140 = vmatpush1.bf16.msra.mxu0 %v120
    %141 = vmatprep.subr.bf16.mxu0 0
    %142 = vmatpush1.bf16.msra.mxu0 %v121
    %143 = vmatprep.subr.bf16.mxu0 0
    %144 = vmatpush1.bf16.msra.mxu0 %v135
    %145 = vmatprep.subr.bf16.mxu0 0
    %146 = vmatpush1.bf16.msra.mxu0 0
    %147 = vmatprep.subr.bf16.mxu0 0
    %148 = vmatpush1.bf16.msra.mxu0 0
    %149 = vmatprep.subr.bf16.mxu0 0
    %150 = vmatpush1.bf16.msra.mxu0 0
    %151 = vmatprep.subr.bf16.mxu0 0
    %152 = vmatpush1.bf16.msra.mxu0 0
    %153 = vmatprep.subr.bf16.mxu0 0
    %154 = vmatpush1.bf16.msra.mxu0 0
    %155 = vmatprep.subr.bf16.mxu0 0
    %156 = vmatpush1.bf16.msra.mxu0 0
    %157 = vmatprep.subr.bf16.mxu0 0
    %158 = vmatpush1.bf16.msra.mxu0 0
    %159 = vmatprep.subr.bf16.mxu0 0
    %160 = vmatpush1.bf16.msra.mxu0 0
    %161 = vmatprep.subr.bf16.mxu0 0
    %162 = vmatpush1.bf16.msra.mxu0 0
    %163 = vmatprep.subr.bf16.mxu0 0
    %164 = vmatpush1.bf16.msra.mxu0 0
    %165 = vmatprep.subr.bf16.mxu0 0
    %166 = vmatpush1.bf16.msra.mxu0 0
    %167 = vmatprep.subr.bf16.mxu0 0
    %168 = vmatpush1.bf16.msra.mxu0 0
    %169 = vmatprep.mubr.bf16.mxu0 0
    %170 = vmatmul.mubr.bf16.gmra.mrb[0].mxu0 %v128
    %v171 = vpop.f32.mrb[0].mxu0
    %v172 = vadd.f32 0.0, %v171
    %v173 = vpop.f32.mrb[0].mxu0
    %v174 = vpop.f32.mrb[0].mxu0
    %v175 = vadd.f32 0.0, %v174
    %v176 = vpop.f32.mrb[0].mxu0
    %177 = vmatprep.mubr.bf16.mxu0 0
    %178 = vmatmul.mubr.bf16.gmra.mrb[0].mxu0 %v131
    %v179 = vpop.f32.mrb[0].mxu0
    %v180 = vadd.f32 0.0, %v179
    %v181 = vpop.f32.mrb[0].mxu0
    %v182 = vpop.f32.mrb[0].mxu0
    %v183 = vadd.f32 0.0, %v182
    %v184 = vpop.f32.mrb[0].mxu0
    %185 = vdwg.mxu0
    %vm186 = vcmask 523264
    %187 = vst.msk [vmem:[#allocation2] sm:$0xff] %vm186, %v172
    %188 = vst.msk [vmem:[#allocation2 + $0x8] sm:$0xff] %vm186, %v175
    %189 = vst.msk [vmem:[#allocation2 + $0x10] sm:$0xff] %vm186, %v180
    %190 = vst.msk [vmem:[#allocation2 + $0x18] sm:$0xff] %vm186, %v183
    %v191 = vld [vmem:[#allocation3] sm:$0xff]
    %v192 = vld [vmem:[#allocation2] sm:$0xff]
    %v193 = vpack.c.bf16 %v191, %v191
    %v194 = vld [vmem:[%s3] sm:$0xf]
    %v195 = vld [vmem:[%s3 + $0x4] sm:$0xf]
    %v196 = vld [vmem:[%s3 + $0x8] sm:$0xf]
    %v197 = vld [vmem:[%s3 + $0xc] sm:$0xf]
    %v202 = vunpack.c.l.b16 %v194
    %v203 = vunpack.c.l.b16 %v195
    %v204 = vunpack.c.l.b16 %v196
    %v205 = vunpack.c.l.b16 %v197
    %v206 = vpack.c.b16 %v203, %v202
    %v207 = vpack.c.b16 %v205, %v204
    %vm210 = vcmask 261120
    %v212 = vsel %vm210, %v193, 0
    %214 = vmatprep.subr.bf16.mxu0 0
    %215 = vmatpush1.bf16.msra.mxu0 %v206
    %216 = vmatprep.subr.bf16.mxu0 0
    %217 = vmatpush1.bf16.msra.mxu0 %v207
    %218 = vmatprep.subr.bf16.mxu0 0
    %219 = vmatpush1.bf16.msra.mxu0 0
    %220 = vmatprep.subr.bf16.mxu0 0
    %221 = vmatpush1.bf16.msra.mxu0 0
    %222 = vmatprep.subr.bf16.mxu0 0
    %223 = vmatpush1.bf16.msra.mxu0 0
    %224 = vmatprep.subr.bf16.mxu0 0
    %225 = vmatpush1.bf16.msra.mxu0 0
    %226 = vmatprep.subr.bf16.mxu0 0
    %227 = vmatpush1.bf16.msra.mxu0 0
    %228 = vmatprep.subr.bf16.mxu0 0
    %229 = vmatpush1.bf16.msra.mxu0 0
    %230 = vmatprep.subr.bf16.mxu0 0
    %231 = vmatpush1.bf16.msra.mxu0 0
    %232 = vmatprep.subr.bf16.mxu0 0
    %233 = vmatpush1.bf16.msra.mxu0 0
    %234 = vmatprep.subr.bf16.mxu0 0
    %235 = vmatpush1.bf16.msra.mxu0 0
    %236 = vmatprep.subr.bf16.mxu0 0
    %237 = vmatpush1.bf16.msra.mxu0 0
    %238 = vmatprep.subr.bf16.mxu0 0
    %239 = vmatpush1.bf16.msra.mxu0 0
    %240 = vmatprep.subr.bf16.mxu0 0
    %241 = vmatpush1.bf16.msra.mxu0 0
    %242 = vmatprep.subr.bf16.mxu0 0
    %243 = vmatpush1.bf16.msra.mxu0 0
    %244 = vmatprep.subr.bf16.mxu0 0
    %245 = vmatpush1.bf16.msra.mxu0 0
    %246 = vmatprep.mubr.bf16.mxu0 0
    %247 = vmatmul.mubr.bf16.gmra.mrb[0].mxu0 %v212
    %v248 = vpop.f32.mrb[0].mxu0
    %v249 = vadd.f32 0.0, %v248
    %v250 = vpop.f32.mrb[0].mxu0
    %v251 = vpop.f32.mrb[0].mxu0
    %v252 = vpop.f32.mrb[0].mxu0
    %253 = vdwg.mxu0
    %v254 = vadd.f32 %v192, %v249
    %v255 = vmul.f32 %v254, 0.5
    %v256 = vtanh.pop %v255
    %v257 = vmul.f32 %v256, 0.5
    %v258 = vadd.f32 %v257, 0.5
    %v259 = vtanh.pop %v254
    %261 = vrot.lane.b32.xlu0 %v191, 32
    %v262 = vpop.permute.xlu0 %261
    %v264 = vsub.f32 %v259, %v262
    %266 = vrot.lane.b32.xlu0 %v264, 96
    %v267 = vpop.permute.xlu0 %266
    %v269 = vmul.f32 %v258, %v267
    %v270 = vadd.f32 %v191, %v269
    %v271 = vpack.c.bf16 %v270, %v270
    %v272 = vld [vmem:[%s4] sm:$0xf]
    %v273 = vld [vmem:[%s4 + $0x10] sm:$0xf]
    %v274 = vld [vmem:[%s4 + $0x20] sm:$0xf]
    %v275 = vld [vmem:[%s4 + $0x30] sm:$0xf]
    %v280 = vunpack.c.l.b16 %v272
    %v281 = vunpack.c.l.b16 %v273
    %v282 = vunpack.c.l.b16 %v274
    %v283 = vunpack.c.l.b16 %v275
    %v284 = vpack.c.b16 %v281, %v280
    %v285 = vpack.c.b16 %v283, %v282
    %v289 = vsel %vm210, %v271, 0
    %291 = vmatprep.subr.bf16.mxu0 0
    %292 = vmatpush1.bf16.msra.mxu0 %v284
    %293 = vmatprep.subr.bf16.mxu0 0
    %294 = vmatpush1.bf16.msra.mxu0 %v285
    %295 = vmatprep.subr.bf16.mxu0 0
    %296 = vmatpush1.bf16.msra.mxu0 0
    %297 = vmatprep.subr.bf16.mxu0 0
    %298 = vmatpush1.bf16.msra.mxu0 0
    %299 = vmatprep.subr.bf16.mxu0 0
    %300 = vmatpush1.bf16.msra.mxu0 0
    %301 = vmatprep.subr.bf16.mxu0 0
    %302 = vmatpush1.bf16.msra.mxu0 0
    %303 = vmatprep.subr.bf16.mxu0 0
    %304 = vmatpush1.bf16.msra.mxu0 0
    %305 = vmatprep.subr.bf16.mxu0 0
    %306 = vmatpush1.bf16.msra.mxu0 0
    %307 = vmatprep.subr.bf16.mxu0 0
    %308 = vmatpush1.bf16.msra.mxu0 0
    %309 = vmatprep.subr.bf16.mxu0 0
    %310 = vmatpush1.bf16.msra.mxu0 0
    %311 = vmatprep.subr.bf16.mxu0 0
    %312 = vmatpush1.bf16.msra.mxu0 0
    %313 = vmatprep.subr.bf16.mxu0 0
    %314 = vmatpush1.bf16.msra.mxu0 0
    %315 = vmatprep.subr.bf16.mxu0 0
    %316 = vmatpush1.bf16.msra.mxu0 0
    %317 = vmatprep.subr.bf16.mxu0 0
    %318 = vmatpush1.bf16.msra.mxu0 0
    %319 = vmatprep.subr.bf16.mxu0 0
    %320 = vmatpush1.bf16.msra.mxu0 0
    %321 = vmatprep.subr.bf16.mxu0 0
    %322 = vmatpush1.bf16.msra.mxu0 0
    %323 = vmatprep.mubr.bf16.mxu0 0
    %324 = vmatmul.mubr.bf16.gmra.mrb[0].mxu0 %v289
    %v325 = vpop.f32.mrb[0].mxu0
    %v326 = vadd.f32 0.0, %v325
    %v327 = vpop.f32.mrb[0].mxu0
    %v328 = vpop.f32.mrb[0].mxu0
    %v329 = vpop.f32.mrb[0].mxu0
    %330 = vdwg.mxu0
    %v331 = vmul.f32 %v326, 0.5
    %v332 = vtanh.pop %v331
    %v333 = vmul.f32 %v332, 0.5
    %v334 = vadd.f32 %v333, 0.5
    %336 = vrot.lane.b32.xlu0 %v270, 32
    %v337 = vpop.permute.xlu0 %336
    %v339 = vsub.f32 %v334, %v337
    %341 = vrot.lane.b32.xlu0 %v339, 96
    %v342 = vpop.permute.xlu0 %341
    %v344 = vmul.f32 %v334, %v342
    %v345 = vadd.f32 %v270, %v344
    %v346 = vpack.c.bf16 %v345, %v345
    %v347 = vld [vmem:[%s4] sm:$0xff]
    %v348 = vld [vmem:[%s4 + $0x10] sm:$0xff]
    %v349 = vld [vmem:[%s4 + $0x20] sm:$0xff]
    %v350 = vld [vmem:[%s4 + $0x30] sm:$0xff]
    %v355 = vunpack.c.l.b16 %v347
    %v356 = vunpack.c.h.b16 %v347
    %v357 = vunpack.c.l.b16 %v348
    %v358 = vunpack.c.h.b16 %v348
    %v359 = vunpack.c.l.b16 %v349
    %v360 = vunpack.c.h.b16 %v349
    %v361 = vunpack.c.l.b16 %v350
    %v362 = vunpack.c.h.b16 %v350
    %v363 = vpack.c.b16 %v357, %v355
    %v364 = vpack.c.b16 %v358, %v356
    %v365 = vpack.c.b16 %v361, %v359
    %v366 = vpack.c.b16 %v362, %v360
    %367 = vrot.lane.b32.xlu0 %v363, 64
    %v368 = vpop.permute.xlu0 %367
    %369 = vrot.lane.b32.xlu0 %v364, 64
    %v370 = vpop.permute.xlu0 %369
    %371 = vrot.lane.b32.xlu0 %v365, 64
    %v372 = vpop.permute.xlu0 %371
    %373 = vrot.lane.b32.xlu0 %v366, 64
    %v374 = vpop.permute.xlu0 %373
    %vm375 = vcmask 523264
    %v376 = vsel %vm375, %v368, %v370
    %v377 = vsel %vm375, %v372, %v374
    %v383 = vsel %vm210, %v346, 0
    %385 = vmatprep.subr.bf16.mxu0 %v370
    %386 = vmatpush1.bf16.msra.mxu0 %v376
    %387 = vmatprep.subr.bf16.mxu0 %v374
    %388 = vmatpush1.bf16.msra.mxu0 %v377
    %389 = vmatprep.subr.bf16.mxu0 0
    %390 = vmatpush1.bf16.msra.mxu0 0
    %391 = vmatprep.subr.bf16.mxu0 0
    %392 = vmatpush1.bf16.msra.mxu0 0
    %393 = vmatprep.subr.bf16.mxu0 0
    %394 = vmatpush1.bf16.msra.mxu0 0
    %395 = vmatprep.subr.bf16.mxu0 0
    %396 = vmatpush1.bf16.msra.mxu0 0
    %397 = vmatprep.subr.bf16.mxu0 0
    %398 = vmatpush1.bf16.msra.mxu0 0
    %399 = vmatprep.subr.bf16.mxu0 0
    %400 = vmatpush1.bf16.msra.mxu0 0
    %401 = vmatprep.subr.bf16.mxu0 0
    %402 = vmatpush1.bf16.msra.mxu0 0
    %403 = vmatprep.subr.bf16.mxu0 0
    %404 = vmatpush1.bf16.msra.mxu0 0
    %405 = vmatprep.subr.bf16.mxu0 0
    %406 = vmatpush1.bf16.msra.mxu0 0
    %407 = vmatprep.subr.bf16.mxu0 0
    %408 = vmatpush1.bf16.msra.mxu0 0
    %409 = vmatprep.subr.bf16.mxu0 0
    %410 = vmatpush1.bf16.msra.mxu0 0
    %411 = vmatprep.subr.bf16.mxu0 0
    %412 = vmatpush1.bf16.msra.mxu0 0
    %413 = vmatprep.subr.bf16.mxu0 0
    %414 = vmatpush1.bf16.msra.mxu0 0
    %415 = vmatprep.subr.bf16.mxu0 0
    %416 = vmatpush1.bf16.msra.mxu0 0
    %417 = vmatprep.mubr.bf16.mxu0 0
    %418 = vmatmul.mubr.bf16.gmra.mrb[0].mxu0 %v383
    %v419 = vpop.f32.mrb[0].mxu0
    %v420 = vadd.f32 0.0, %v419
    %v421 = vpop.f32.mrb[0].mxu0
    %v422 = vadd.f32 0.0, %v421
    %v423 = vpop.f32.mrb[0].mxu0
    %v424 = vpop.f32.mrb[0].mxu0
    %425 = vdwg.mxu0
    %v426 = vmul.f32 %v420, 0.5
    %v427 = vtanh.pop %v426
    %v428 = vmul.f32 %v427, 0.5
    %v429 = vadd.f32 %v428, 0.5
    %431 = vrot.lane.b32.xlu0 %v345, 96
    %v432 = vpop.permute.xlu0 %431
    %v434 = vsub.f32 %v420, %v432
    %436 = vrot.lane.b32.xlu0 %v434, 32
    %v437 = vpop.permute.xlu0 %436
    %v439 = vmul.f32 %v429, %v437
    %v440 = vadd.f32 %v345, %v439
    %v441 = vmax.f32 %v422, 0.0
    %v442 = vsub.f32 %v441, %v345
    %444 = vrot.lane.b32.xlu0 %v442, 32
    %v445 = vpop.permute.xlu0 %444
    %v447 = vmul.f32 %v429, %v445
    %449 = vrot.lane.b32.xlu0 %v447, 96
    %v450 = vpop.permute.xlu0 %449
    %v452 = vadd.f32 %v345, %v450
    %453 = vrot.lane.b32.xlu0 %v345, 32
    %v454 = vpop.permute.xlu0 %453
    %v456 = vsub.f32 %v441, %v454
    %458 = vrot.lane.b32.xlu0 %v456, 32
    %v459 = vpop.permute.xlu0 %458
    %v461 = vmul.f32 %v429, %v459
    %463 = vrot.lane.b32.xlu0 %v461, 64
    %v464 = vpop.permute.xlu0 %463
    %v466 = vadd.f32 %v345, %v464
    %v467 = vpack.c.bf16 %v452, %v452
    %v468 = vld [vmem:[%s4 + $0x8] sm:$0xf]
    %v469 = vld [vmem:[%s4 + $0x18] sm:$0xf]
    %v470 = vld [vmem:[%s4 + $0x28] sm:$0xf]
    %v471 = vld [vmem:[%s4 + $0x38] sm:$0xf]
    %v476 = vunpack.c.l.b16 %v468
    %v477 = vunpack.c.l.b16 %v469
    %v478 = vunpack.c.l.b16 %v470
    %v479 = vunpack.c.l.b16 %v471
    %v480 = vpack.c.b16 %v477, %v476
    %v481 = vpack.c.b16 %v479, %v478
    %v485 = vsel %vm210, %v467, 0
    %487 = vmatprep.subr.bf16.mxu0 0
    %488 = vmatpush1.bf16.msra.mxu0 %v480
    %489 = vmatprep.subr.bf16.mxu0 0
    %490 = vmatpush1.bf16.msra.mxu0 %v481
    %491 = vmatprep.subr.bf16.mxu0 0
    %492 = vmatpush1.bf16.msra.mxu0 0
    %493 = vmatprep.subr.bf16.mxu0 0
    %494 = vmatpush1.bf16.msra.mxu0 0
    %495 = vmatprep.subr.bf16.mxu0 0
    %496 = vmatpush1.bf16.msra.mxu0 0
    %497 = vmatprep.subr.bf16.mxu0 0
    %498 = vmatpush1.bf16.msra.mxu0 0
    %499 = vmatprep.subr.bf16.mxu0 0
    %500 = vmatpush1.bf16.msra.mxu0 0
    %501 = vmatprep.subr.bf16.mxu0 0
    %502 = vmatpush1.bf16.msra.mxu0 0
    %503 = vmatprep.subr.bf16.mxu0 0
    %504 = vmatpush1.bf16.msra.mxu0 0
    %505 = vmatprep.subr.bf16.mxu0 0
    %506 = vmatpush1.bf16.msra.mxu0 0
    %507 = vmatprep.subr.bf16.mxu0 0
    %508 = vmatpush1.bf16.msra.mxu0 0
    %509 = vmatprep.subr.bf16.mxu0 0
    %510 = vmatpush1.bf16.msra.mxu0 0
    %511 = vmatprep.subr.bf16.mxu0 0
    %512 = vmatpush1.bf16.msra.mxu0 0
    %513 = vmatprep.subr.bf16.mxu0 0
    %514 = vmatpush1.bf16.msra.mxu0 0
    %515 = vmatprep.subr.bf16.mxu0 0
    %516 = vmatpush1.bf16.msra.mxu0 0
    %517 = vmatprep.subr.bf16.mxu0 0
    %518 = vmatpush1.bf16.msra.mxu0 0
    %519 = vmatprep.mubr.bf16.mxu0 0
    %520 = vmatmul.mubr.bf16.gmra.mrb[0].mxu0 %v485
    %v521 = vpop.f32.mrb[0].mxu0
    %v522 = vadd.f32 0.0, %v521
    %v523 = vpop.f32.mrb[0].mxu0
    %v524 = vpop.f32.mrb[0].mxu0
    %v525 = vpop.f32.mrb[0].mxu0
    %526 = vdwg.mxu0
    %v527 = vmul.f32 %v522, 0.5
    %v528 = vtanh.pop %v527
    %v529 = vmul.f32 %v528, 0.5
    %v530 = vadd.f32 %v529, 0.5
    %v531 = vtanh.pop %v522
    %533 = vrot.lane.b32.xlu0 %v452, 32
    %v534 = vpop.permute.xlu0 %533
    %v536 = vsub.f32 %v531, %v534
    %538 = vrot.lane.b32.xlu0 %v536, 96
    %v539 = vpop.permute.xlu0 %538
    %v541 = vmul.f32 %v530, %v539
    %v542 = vadd.f32 %v452, %v541
    %v543 = vpack.c.bf16 %v466, %v466
    %544 = vrot.lane.b32.xlu0 %v480, 64
    %v545 = vpop.permute.xlu0 %544
    %546 = vrot.lane.b32.xlu0 %v481, 64
    %v547 = vpop.permute.xlu0 %546
    %v551 = vsel %vm210, %v543, 0
    %553 = vmatprep.subr.bf16.mxu0 0
    %554 = vmatpush1.bf16.msra.mxu0 %v545
    %555 = vmatprep.subr.bf16.mxu0 0
    %556 = vmatpush1.bf16.msra.mxu0 %v547
    %557 = vmatprep.subr.bf16.mxu0 0
    %558 = vmatpush1.bf16.msra.mxu0 0
    %559 = vmatprep.subr.bf16.mxu0 0
    %560 = vmatpush1.bf16.msra.mxu0 0
    %561 = vmatprep.subr.bf16.mxu0 0
    %562 = vmatpush1.bf16.msra.mxu0 0
    %563 = vmatprep.subr.bf16.mxu0 0
    %564 = vmatpush1.bf16.msra.mxu0 0
    %565 = vmatprep.subr.bf16.mxu0 0
    %566 = vmatpush1.bf16.msra.mxu0 0
    %567 = vmatprep.subr.bf16.mxu0 0
    %568 = vmatpush1.bf16.msra.mxu0 0
    %569 = vmatprep.subr.bf16.mxu0 0
    %570 = vmatpush1.bf16.msra.mxu0 0
    %571 = vmatprep.subr.bf16.mxu0 0
    %572 = vmatpush1.bf16.msra.mxu0 0
    %573 = vmatprep.subr.bf16.mxu0 0
    %574 = vmatpush1.bf16.msra.mxu0 0
    %575 = vmatprep.subr.bf16.mxu0 0
    %576 = vmatpush1.bf16.msra.mxu0 0
    %577 = vmatprep.subr.bf16.mxu0 0
    %578 = vmatpush1.bf16.msra.mxu0 0
    %579 = vmatprep.subr.bf16.mxu0 0
    %580 = vmatpush1.bf16.msra.mxu0 0
    %581 = vmatprep.subr.bf16.mxu0 0
    %582 = vmatpush1.bf16.msra.mxu0 0
    %583 = vmatprep.subr.bf16.mxu0 0
    %584 = vmatpush1.bf16.msra.mxu0 0
    %585 = vmatprep.mubr.bf16.mxu0 0
    %586 = vmatmul.mubr.bf16.gmra.mrb[0].mxu0 %v551
    %v587 = vpop.f32.mrb[0].mxu0
    %v588 = vadd.f32 0.0, %v587
    %v589 = vpop.f32.mrb[0].mxu0
    %v590 = vpop.f32.mrb[0].mxu0
    %v591 = vpop.f32.mrb[0].mxu0
    %592 = vdwg.mxu0
    %v593 = vmul.f32 %v588, 0.5
    %v594 = vtanh.pop %v593
    %v595 = vmul.f32 %v594, 0.5
    %v596 = vadd.f32 %v595, 0.5
    %v597 = vtanh.pop %v588
    %599 = vrot.lane.b32.xlu0 %v466, 32
    %v600 = vpop.permute.xlu0 %599
    %v602 = vsub.f32 %v597, %v600
    %604 = vrot.lane.b32.xlu0 %v602, 96
    %v605 = vpop.permute.xlu0 %604
    %v607 = vmul.f32 %v596, %v605
    %v608 = vadd.f32 %v466, %v607
    %v609 = vpack.c.bf16 %v542, %v542
    %v610 = vld [vmem:[%s4 + $0xc] sm:$0xf]
    %v611 = vld [vmem:[%s4 + $0x1c] sm:$0xf]
    %v612 = vld [vmem:[%s4 + $0x2c] sm:$0xf]
    %v613 = vld [vmem:[%s4 + $0x3c] sm:$0xf]
    %v618 = vunpack.c.l.b16 %v610
    %v619 = vunpack.c.l.b16 %v611
    %v620 = vunpack.c.l.b16 %v612
    %v621 = vunpack.c.l.b16 %v613
    %v622 = vpack.c.b16 %v619, %v618
    %v623 = vpack.c.b16 %v621, %v620
    %v627 = vsel %vm210, %v609, 0
    %629 = vmatprep.subr.bf16.mxu0 0
    %630 = vmatpush1.bf16.msra.mxu0 %v622
    %631 = vmatprep.subr.bf16.mxu0 0
    %632 = vmatpush1.bf16.msra.mxu0 %v623
    %633 = vmatprep.subr.bf16.mxu0 0
    %634 = vmatpush1.bf16.msra.mxu0 0
    %635 = vmatprep.subr.bf16.mxu0 0
    %636 = vmatpush1.bf16.msra.mxu0 0
    %637 = vmatprep.subr.bf16.mxu0 0
    %638 = vmatpush1.bf16.msra.mxu0 0
    %639 = vmatprep.subr.bf16.mxu0 0
    %640 = vmatpush1.bf16.msra.mxu0 0
    %641 = vmatprep.subr.bf16.mxu0 0
    %642 = vmatpush1.bf16.msra.mxu0 0
    %643 = vmatprep.subr.bf16.mxu0 0
    %644 = vmatpush1.bf16.msra.mxu0 0
    %645 = vmatprep.subr.bf16.mxu0 0
    %646 = vmatpush1.bf16.msra.mxu0 0
    %647 = vmatprep.subr.bf16.mxu0 0
    %648 = vmatpush1.bf16.msra.mxu0 0
    %649 = vmatprep.subr.bf16.mxu0 0
    %650 = vmatpush1.bf16.msra.mxu0 0
    %651 = vmatprep.subr.bf16.mxu0 0
    %652 = vmatpush1.bf16.msra.mxu0 0
    %653 = vmatprep.subr.bf16.mxu0 0
    %654 = vmatpush1.bf16.msra.mxu0 0
    %655 = vmatprep.subr.bf16.mxu0 0
    %656 = vmatpush1.bf16.msra.mxu0 0
    %657 = vmatprep.subr.bf16.mxu0 0
    %658 = vmatpush1.bf16.msra.mxu0 0
    %659 = vmatprep.subr.bf16.mxu0 0
    %660 = vmatpush1.bf16.msra.mxu0 0
    %661 = vmatprep.mubr.bf16.mxu0 0
    %662 = vmatmul.mubr.bf16.gmra.mrb[0].mxu0 %v627
    %v663 = vpop.f32.mrb[0].mxu0
    %v664 = vadd.f32 0.0, %v663
    %v665 = vpop.f32.mrb[0].mxu0
    %v666 = vpop.f32.mrb[0].mxu0
    %v667 = vpop.f32.mrb[0].mxu0
    %668 = vdwg.mxu0
    %v669 = vmul.f32 %v664, 0.5
    %v670 = vtanh.pop %v669
    %v671 = vmul.f32 %v670, 0.5
    %v672 = vadd.f32 %v671, 0.5
    %v673 = vmax.f32 %v664, 0.0
    %675 = vrot.lane.b32.xlu0 %v542, 64
    %v676 = vpop.permute.xlu0 %675
    %v678 = vsub.f32 %v673, %v676
    %680 = vrot.lane.b32.xlu0 %v678, 64
    %v681 = vpop.permute.xlu0 %680
    %v683 = vmul.f32 %v672, %v681
    %v684 = vadd.f32 %v542, %v683
    %685 = vrot.lane.b32.xlu0 %v542, 96
    %v686 = vpop.permute.xlu0 %685
    %v688 = vsub.f32 %v672, %v686
    %690 = vrot.lane.b32.xlu0 %v688, 64
    %v691 = vpop.permute.xlu0 %690
    %v693 = vmul.f32 %v672, %v691
    %695 = vrot.lane.b32.xlu0 %v693, 96
    %v696 = vpop.permute.xlu0 %695
    %v698 = vadd.f32 %v542, %v696
    %v699 = vadd.f32 %v345, %v452
    %v700 = vadd.f32 %v699, %v466
    %v701 = vadd.f32 %v700, %v440
    %v702 = vadd.f32 %v701, %v542
    %v703 = vadd.f32 %v702, %v698
    %v704 = vadd.f32 %v703, %v608
    %v705 = vadd.f32 %v704, %v684
    %v706 = vmul.f32 %v705, 0.125
    %v707 = vld [vmem:[#allocation2 + $0x8] sm:$0xff]
    %v708 = vpack.c.bf16 %v706, %v706
    %v710 = vsel %vm210, %v708, 0
    %712 = vmatprep.subr.bf16.mxu0 0
    %713 = vmatpush1.bf16.msra.mxu0 %v206
    %714 = vmatprep.subr.bf16.mxu0 0
    %715 = vmatpush1.bf16.msra.mxu0 %v207
    %716 = vmatprep.subr.bf16.mxu0 0
    %717 = vmatpush1.bf16.msra.mxu0 0
    %718 = vmatprep.subr.bf16.mxu0 0
    %719 = vmatpush1.bf16.msra.mxu0 0
    %720 = vmatprep.subr.bf16.mxu0 0
    %721 = vmatpush1.bf16.msra.mxu0 0
    %722 = vmatprep.subr.bf16.mxu0 0
    %723 = vmatpush1.bf16.msra.mxu0 0
    %724 = vmatprep.subr.bf16.mxu0 0
    %725 = vmatpush1.bf16.msra.mxu0 0
    %726 = vmatprep.subr.bf16.mxu0 0
    %727 = vmatpush1.bf16.msra.mxu0 0
    %728 = vmatprep.subr.bf16.mxu0 0
    %729 = vmatpush1.bf16.msra.mxu0 0
    %730 = vmatprep.subr.bf16.mxu0 0
    %731 = vmatpush1.bf16.msra.mxu0 0
    %732 = vmatprep.subr.bf16.mxu0 0
    %733 = vmatpush1.bf16.msra.mxu0 0
    %734 = vmatprep.subr.bf16.mxu0 0
    %735 = vmatpush1.bf16.msra.mxu0 0
    %736 = vmatprep.subr.bf16.mxu0 0
    %737 = vmatpush1.bf16.msra.mxu0 0
    %738 = vmatprep.subr.bf16.mxu0 0
    %739 = vmatpush1.bf16.msra.mxu0 0
    %740 = vmatprep.subr.bf16.mxu0 0
    %741 = vmatpush1.bf16.msra.mxu0 0
    %742 = vmatprep.subr.bf16.mxu0 0
    %743 = vmatpush1.bf16.msra.mxu0 0
    %744 = vmatprep.mubr.bf16.mxu0 0
    %745 = vmatmul.mubr.bf16.gmra.mrb[0].mxu0 %v710
    %v746 = vpop.f32.mrb[0].mxu0
    %v747 = vadd.f32 0.0, %v746
    %v748 = vpop.f32.mrb[0].mxu0
    %v749 = vpop.f32.mrb[0].mxu0
    %v750 = vpop.f32.mrb[0].mxu0
    %751 = vdwg.mxu0
    %v752 = vadd.f32 %v707, %v747
    %v753 = vmul.f32 %v752, 0.5
    %v754 = vtanh.pop %v753
    %v755 = vmul.f32 %v754, 0.5
    %v756 = vadd.f32 %v755, 0.5
    %v757 = vtanh.pop %v752
    %759 = vrot.lane.b32.xlu0 %v706, 32
    %v760 = vpop.permute.xlu0 %759
    %v762 = vsub.f32 %v757, %v760
    %764 = vrot.lane.b32.xlu0 %v762, 96
    %v765 = vpop.permute.xlu0 %764
    %v767 = vmul.f32 %v756, %v765
    %v768 = vadd.f32 %v706, %v767
    %v769 = vpack.c.bf16 %v768, %v768
    %v771 = vsel %vm210, %v769, 0
    %773 = vmatprep.subr.bf16.mxu0 0
    %774 = vmatpush1.bf16.msra.mxu0 %v284
    %775 = vmatprep.subr.bf16.mxu0 0
    %776 = vmatpush1.bf16.msra.mxu0 %v285
    %777 = vmatprep.subr.bf16.mxu0 0
    %778 = vmatpush1.bf16.msra.mxu0 0
    %779 = vmatprep.subr.bf16.mxu0 0
    %780 = vmatpush1.bf16.msra.mxu0 0
    %781 = vmatprep.subr.bf16.mxu0 0
    %782 = vmatpush1.bf16.msra.mxu0 0
    %783 = vmatprep.subr.bf16.mxu0 0
    %784 = vmatpush1.bf16.msra.mxu0 0
    %785 = vmatprep.subr.bf16.mxu0 0
    %786 = vmatpush1.bf16.msra.mxu0 0
    %787 = vmatprep.subr.bf16.mxu0 0
    %788 = vmatpush1.bf16.msra.mxu0 0
    %789 = vmatprep.subr.bf16.mxu0 0
    %790 = vmatpush1.bf16.msra.mxu0 0
    %791 = vmatprep.subr.bf16.mxu0 0
    %792 = vmatpush1.bf16.msra.mxu0 0
    %793 = vmatprep.subr.bf16.mxu0 0
    %794 = vmatpush1.bf16.msra.mxu0 0
    %795 = vmatprep.subr.bf16.mxu0 0
    %796 = vmatpush1.bf16.msra.mxu0 0
    %797 = vmatprep.subr.bf16.mxu0 0
    %798 = vmatpush1.bf16.msra.mxu0 0
    %799 = vmatprep.subr.bf16.mxu0 0
    %800 = vmatpush1.bf16.msra.mxu0 0
    %801 = vmatprep.subr.bf16.mxu0 0
    %802 = vmatpush1.bf16.msra.mxu0 0
    %803 = vmatprep.subr.bf16.mxu0 0
    %804 = vmatpush1.bf16.msra.mxu0 0
    %805 = vmatprep.mubr.bf16.mxu0 0
    %806 = vmatmul.mubr.bf16.gmra.mrb[0].mxu0 %v771
    %v807 = vpop.f32.mrb[0].mxu0
    %v808 = vadd.f32 0.0, %v807
    %v809 = vpop.f32.mrb[0].mxu0
    %v810 = vpop.f32.mrb[0].mxu0
    %v811 = vpop.f32.mrb[0].mxu0
    %812 = vdwg.mxu0
    %v813 = vmul.f32 %v808, 0.5
    %v814 = vtanh.pop %v813
    %v815 = vmul.f32 %v814, 0.5
    %v816 = vadd.f32 %v815, 0.5
    %818 = vrot.lane.b32.xlu0 %v768, 32
    %v819 = vpop.permute.xlu0 %818
    %v821 = vsub.f32 %v816, %v819
    %823 = vrot.lane.b32.xlu0 %v821, 96
    %v824 = vpop.permute.xlu0 %823
    %v826 = vmul.f32 %v816, %v824
    %v827 = vadd.f32 %v768, %v826
    %v828 = vpack.c.bf16 %v827, %v827
    %v830 = vsel %vm210, %v828, 0
    %832 = vmatprep.subr.bf16.mxu0 %v370
    %833 = vmatpush1.bf16.msra.mxu0 %v376
    %834 = vmatprep.subr.bf16.mxu0 %v374
    %835 = vmatpush1.bf16.msra.mxu0 %v377
    %836 = vmatprep.subr.bf16.mxu0 0
    %837 = vmatpush1.bf16.msra.mxu0 0
    %838 = vmatprep.subr.bf16.mxu0 0
    %839 = vmatpush1.bf16.msra.mxu0 0
    %840 = vmatprep.subr.bf16.mxu0 0
    %841 = vmatpush1.bf16.msra.mxu0 0
    %842 = vmatprep.subr.bf16.mxu0 0
    %843 = vmatpush1.bf16.msra.mxu0 0
    %844 = vmatprep.subr.bf16.mxu0 0
    %845 = vmatpush1.bf16.msra.mxu0 0
    %846 = vmatprep.subr.bf16.mxu0 0
    %847 = vmatpush1.bf16.msra.mxu0 0
    %848 = vmatprep.subr.bf16.mxu0 0
    %849 = vmatpush1.bf16.msra.mxu0 0
    %850 = vmatprep.subr.bf16.mxu0 0
    %851 = vmatpush1.bf16.msra.mxu0 0
    %852 = vmatprep.subr.bf16.mxu0 0
    %853 = vmatpush1.bf16.msra.mxu0 0
    %854 = vmatprep.subr.bf16.mxu0 0
    %855 = vmatpush1.bf16.msra.mxu0 0
    %856 = vmatprep.subr.bf16.mxu0 0
    %857 = vmatpush1.bf16.msra.mxu0 0
    %858 = vmatprep.subr.bf16.mxu0 0
    %859 = vmatpush1.bf16.msra.mxu0 0
    %860 = vmatprep.subr.bf16.mxu0 0
    %861 = vmatpush1.bf16.msra.mxu0 0
    %862 = vmatprep.subr.bf16.mxu0 0
    %863 = vmatpush1.bf16.msra.mxu0 0
    %864 = vmatprep.mubr.bf16.mxu0 0
    %865 = vmatmul.mubr.bf16.gmra.mrb[0].mxu0 %v830
    %v866 = vpop.f32.mrb[0].mxu0
    %v867 = vadd.f32 0.0, %v866
    %v868 = vpop.f32.mrb[0].mxu0
    %v869 = vadd.f32 0.0, %v868
    %v870 = vpop.f32.mrb[0].mxu0
    %v871 = vpop.f32.mrb[0].mxu0
    %872 = vdwg.mxu0
    %v873 = vmul.f32 %v867, 0.5
    %v874 = vtanh.pop %v873
    %v875 = vmul.f32 %v874, 0.5
    %v876 = vadd.f32 %v875, 0.5
    %878 = vrot.lane.b32.xlu0 %v827, 96
    %v879 = vpop.permute.xlu0 %878
    %v881 = vsub.f32 %v867, %v879
    %883 = vrot.lane.b32.xlu0 %v881, 32
    %v884 = vpop.permute.xlu0 %883
    %v886 = vmul.f32 %v876, %v884
    %v887 = vadd.f32 %v827, %v886
    %v888 = vmax.f32 %v869, 0.0
    %v889 = vsub.f32 %v888, %v827
    %891 = vrot.lane.b32.xlu0 %v889, 32
    %v892 = vpop.permute.xlu0 %891
    %v894 = vmul.f32 %v876, %v892
    %896 = vrot.lane.b32.xlu0 %v894, 96
    %v897 = vpop.permute.xlu0 %896
    %v899 = vadd.f32 %v827, %v897
    %900 = vrot.lane.b32.xlu0 %v827, 32
    %v901 = vpop.permute.xlu0 %900
    %v903 = vsub.f32 %v888, %v901
    %905 = vrot.lane.b32.xlu0 %v903, 32
    %v906 = vpop.permute.xlu0 %905
    %v908 = vmul.f32 %v876, %v906
    %910 = vrot.lane.b32.xlu0 %v908, 64
    %v911 = vpop.permute.xlu0 %910
    %v913 = vadd.f32 %v827, %v911
    %v914 = vpack.c.bf16 %v899, %v899
    %v916 = vsel %vm210, %v914, 0
    %918 = vmatprep.subr.bf16.mxu0 0
    %919 = vmatpush1.bf16.msra.mxu0 %v480
    %920 = vmatprep.subr.bf16.mxu0 0
    %921 = vmatpush1.bf16.msra.mxu0 %v481
    %922 = vmatprep.subr.bf16.mxu0 0
    %923 = vmatpush1.bf16.msra.mxu0 0
    %924 = vmatprep.subr.bf16.mxu0 0
    %925 = vmatpush1.bf16.msra.mxu0 0
    %926 = vmatprep.subr.bf16.mxu0 0
    %927 = vmatpush1.bf16.msra.mxu0 0
    %928 = vmatprep.subr.bf16.mxu0 0
    %929 = vmatpush1.bf16.msra.mxu0 0
    %930 = vmatprep.subr.bf16.mxu0 0
    %931 = vmatpush1.bf16.msra.mxu0 0
    %932 = vmatprep.subr.bf16.mxu0 0
    %933 = vmatpush1.bf16.msra.mxu0 0
    %934 = vmatprep.subr.bf16.mxu0 0
    %935 = vmatpush1.bf16.msra.mxu0 0
    %936 = vmatprep.subr.bf16.mxu0 0
    %937 = vmatpush1.bf16.msra.mxu0 0
    %938 = vmatprep.subr.bf16.mxu0 0
    %939 = vmatpush1.bf16.msra.mxu0 0
    %940 = vmatprep.subr.bf16.mxu0 0
    %941 = vmatpush1.bf16.msra.mxu0 0
    %942 = vmatprep.subr.bf16.mxu0 0
    %943 = vmatpush1.bf16.msra.mxu0 0
    %944 = vmatprep.subr.bf16.mxu0 0
    %945 = vmatpush1.bf16.msra.mxu0 0
    %946 = vmatprep.subr.bf16.mxu0 0
    %947 = vmatpush1.bf16.msra.mxu0 0
    %948 = vmatprep.subr.bf16.mxu0 0
    %949 = vmatpush1.bf16.msra.mxu0 0
    %950 = vmatprep.mubr.bf16.mxu0 0
    %951 = vmatmul.mubr.bf16.gmra.mrb[0].mxu0 %v916
    %v952 = vpop.f32.mrb[0].mxu0
    %v953 = vadd.f32 0.0, %v952
    %v954 = vpop.f32.mrb[0].mxu0
    %v955 = vpop.f32.mrb[0].mxu0
    %v956 = vpop.f32.mrb[0].mxu0
    %957 = vdwg.mxu0
    %v958 = vmul.f32 %v953, 0.5
    %v959 = vtanh.pop %v958
    %v960 = vmul.f32 %v959, 0.5
    %v961 = vadd.f32 %v960, 0.5
    %v962 = vtanh.pop %v953
    %964 = vrot.lane.b32.xlu0 %v899, 32
    %v965 = vpop.permute.xlu0 %964
    %v967 = vsub.f32 %v962, %v965
    %969 = vrot.lane.b32.xlu0 %v967, 96
    %v970 = vpop.permute.xlu0 %969
    %v972 = vmul.f32 %v961, %v970
    %v973 = vadd.f32 %v899, %v972
    %v974 = vpack.c.bf16 %v913, %v913
    %v976 = vsel %vm210, %v974, 0
    %978 = vmatprep.subr.bf16.mxu0 0
    %979 = vmatpush1.bf16.msra.mxu0 %v545
    %980 = vmatprep.subr.bf16.mxu0 0
    %981 = vmatpush1.bf16.msra.mxu0 %v547
    %982 = vmatprep.subr.bf16.mxu0 0
    %983 = vmatpush1.bf16.msra.mxu0 0
    %984 = vmatprep.subr.bf16.mxu0 0
    %985 = vmatpush1.bf16.msra.mxu0 0
    %986 = vmatprep.subr.bf16.mxu0 0
    %987 = vmatpush1.bf16.msra.mxu0 0
    %988 = vmatprep.subr.bf16.mxu0 0
    %989 = vmatpush1.bf16.msra.mxu0 0
    %990 = vmatprep.subr.bf16.mxu0 0
    %991 = vmatpush1.bf16.msra.mxu0 0
    %992 = vmatprep.subr.bf16.mxu0 0
    %993 = vmatpush1.bf16.msra.mxu0 0
    %994 = vmatprep.subr.bf16.mxu0 0
    %995 = vmatpush1.bf16.msra.mxu0 0
    %996 = vmatprep.subr.bf16.mxu0 0
    %997 = vmatpush1.bf16.msra.mxu0 0
    %998 = vmatprep.subr.bf16.mxu0 0
    %999 = vmatpush1.bf16.msra.mxu0 0
    %1000 = vmatprep.subr.bf16.mxu0 0
    %1001 = vmatpush1.bf16.msra.mxu0 0
    %1002 = vmatprep.subr.bf16.mxu0 0
    %1003 = vmatpush1.bf16.msra.mxu0 0
    %1004 = vmatprep.subr.bf16.mxu0 0
    %1005 = vmatpush1.bf16.msra.mxu0 0
    %1006 = vmatprep.subr.bf16.mxu0 0
    %1007 = vmatpush1.bf16.msra.mxu0 0
    %1008 = vmatprep.subr.bf16.mxu0 0
    %1009 = vmatpush1.bf16.msra.mxu0 0
    %1010 = vmatprep.mubr.bf16.mxu0 0
    %1011 = vmatmul.mubr.bf16.gmra.mrb[0].mxu0 %v976
    %v1012 = vpop.f32.mrb[0].mxu0
    %v1013 = vadd.f32 0.0, %v1012
    %v1014 = vpop.f32.mrb[0].mxu0
    %v1015 = vpop.f32.mrb[0].mxu0
    %v1016 = vpop.f32.mrb[0].mxu0
    %1017 = vdwg.mxu0
    %v1018 = vmul.f32 %v1013, 0.5
    %v1019 = vtanh.pop %v1018
    %v1020 = vmul.f32 %v1019, 0.5
    %v1021 = vadd.f32 %v1020, 0.5
    %v1022 = vtanh.pop %v1013
    %1024 = vrot.lane.b32.xlu0 %v913, 32
    %v1025 = vpop.permute.xlu0 %1024
    %v1027 = vsub.f32 %v1022, %v1025
    %1029 = vrot.lane.b32.xlu0 %v1027, 96
    %v1030 = vpop.permute.xlu0 %1029
    %v1032 = vmul.f32 %v1021, %v1030
    %v1033 = vadd.f32 %v913, %v1032
    %v1034 = vpack.c.bf16 %v973, %v973
    %v1036 = vsel %vm210, %v1034, 0
    %1038 = vmatprep.subr.bf16.mxu0 0
    %1039 = vmatpush1.bf16.msra.mxu0 %v622
    %1040 = vmatprep.subr.bf16.mxu0 0
    %1041 = vmatpush1.bf16.msra.mxu0 %v623
    %1042 = vmatprep.subr.bf16.mxu0 0
    %1043 = vmatpush1.bf16.msra.mxu0 0
    %1044 = vmatprep.subr.bf16.mxu0 0
    %1045 = vmatpush1.bf16.msra.mxu0 0
    %1046 = vmatprep.subr.bf16.mxu0 0
    %1047 = vmatpush1.bf16.msra.mxu0 0
    %1048 = vmatprep.subr.bf16.mxu0 0
    %1049 = vmatpush1.bf16.msra.mxu0 0
    %1050 = vmatprep.subr.bf16.mxu0 0
    %1051 = vmatpush1.bf16.msra.mxu0 0
    %1052 = vmatprep.subr.bf16.mxu0 0
    %1053 = vmatpush1.bf16.msra.mxu0 0
    %1054 = vmatprep.subr.bf16.mxu0 0
    %1055 = vmatpush1.bf16.msra.mxu0 0
    %1056 = vmatprep.subr.bf16.mxu0 0
    %1057 = vmatpush1.bf16.msra.mxu0 0
    %1058 = vmatprep.subr.bf16.mxu0 0
    %1059 = vmatpush1.bf16.msra.mxu0 0
    %1060 = vmatprep.subr.bf16.mxu0 0
    %1061 = vmatpush1.bf16.msra.mxu0 0
    %1062 = vmatprep.subr.bf16.mxu0 0
    %1063 = vmatpush1.bf16.msra.mxu0 0
    %1064 = vmatprep.subr.bf16.mxu0 0
    %1065 = vmatpush1.bf16.msra.mxu0 0
    %1066 = vmatprep.subr.bf16.mxu0 0
    %1067 = vmatpush1.bf16.msra.mxu0 0
    %1068 = vmatprep.subr.bf16.mxu0 0
    %1069 = vmatpush1.bf16.msra.mxu0 0
    %1070 = vmatprep.mubr.bf16.mxu0 0
    %1071 = vmatmul.mubr.bf16.gmra.mrb[0].mxu0 %v1036
    %v1072 = vpop.f32.mrb[0].mxu0
    %v1073 = vadd.f32 0.0, %v1072
    %v1074 = vpop.f32.mrb[0].mxu0
    %v1075 = vpop.f32.mrb[0].mxu0
    %v1076 = vpop.f32.mrb[0].mxu0
    %1077 = vdwg.mxu0
    %v1078 = vmul.f32 %v1073, 0.5
    %v1079 = vtanh.pop %v1078
    %v1080 = vmul.f32 %v1079, 0.5
    %v1081 = vadd.f32 %v1080, 0.5
    %v1082 = vmax.f32 %v1073, 0.0
    %1084 = vrot.lane.b32.xlu0 %v973, 64
    %v1085 = vpop.permute.xlu0 %1084
    %v1087 = vsub.f32 %v1082, %v1085
    %1089 = vrot.lane.b32.xlu0 %v1087, 64
    %v1090 = vpop.permute.xlu0 %1089
    %v1092 = vmul.f32 %v1081, %v1090
    %v1093 = vadd.f32 %v973, %v1092
    %1094 = vrot.lane.b32.xlu0 %v973, 96
    %v1095 = vpop.permute.xlu0 %1094
    %v1097 = vsub.f32 %v1081, %v1095
    %1099 = vrot.lane.b32.xlu0 %v1097, 64
    %v1100 = vpop.permute.xlu0 %1099
    %v1102 = vmul.f32 %v1081, %v1100
    %1104 = vrot.lane.b32.xlu0 %v1102, 96
    %v1105 = vpop.permute.xlu0 %1104
    %v1107 = vadd.f32 %v973, %v1105
    %v1108 = vadd.f32 %v827, %v899
    %v1109 = vadd.f32 %v1108, %v913
    %v1110 = vadd.f32 %v1109, %v887
    %v1111 = vadd.f32 %v1110, %v973
    %v1112 = vadd.f32 %v1111, %v1107
    %v1113 = vadd.f32 %v1112, %v1033
    %v1114 = vadd.f32 %v1113, %v1093
    %v1115 = vmul.f32 %v1114, 0.125
    %v1116 = vld [vmem:[#allocation2 + $0x10] sm:$0xff]
    %v1117 = vpack.c.bf16 %v1115, %v1115
    %v1119 = vsel %vm210, %v1117, 0
    %1121 = vmatprep.subr.bf16.mxu0 0
    %1122 = vmatpush1.bf16.msra.mxu0 %v206
    %1123 = vmatprep.subr.bf16.mxu0 0
    %1124 = vmatpush1.bf16.msra.mxu0 %v207
    %1125 = vmatprep.subr.bf16.mxu0 0
    %1126 = vmatpush1.bf16.msra.mxu0 0
    %1127 = vmatprep.subr.bf16.mxu0 0
    %1128 = vmatpush1.bf16.msra.mxu0 0
    %1129 = vmatprep.subr.bf16.mxu0 0
    %1130 = vmatpush1.bf16.msra.mxu0 0
    %1131 = vmatprep.subr.bf16.mxu0 0
    %1132 = vmatpush1.bf16.msra.mxu0 0
    %1133 = vmatprep.subr.bf16.mxu0 0
    %1134 = vmatpush1.bf16.msra.mxu0 0
    %1135 = vmatprep.subr.bf16.mxu0 0
    %1136 = vmatpush1.bf16.msra.mxu0 0
    %1137 = vmatprep.subr.bf16.mxu0 0
    %1138 = vmatpush1.bf16.msra.mxu0 0
    %1139 = vmatprep.subr.bf16.mxu0 0
    %1140 = vmatpush1.bf16.msra.mxu0 0
    %1141 = vmatprep.subr.bf16.mxu0 0
    %1142 = vmatpush1.bf16.msra.mxu0 0
    %1143 = vmatprep.subr.bf16.mxu0 0
    %1144 = vmatpush1.bf16.msra.mxu0 0
    %1145 = vmatprep.subr.bf16.mxu0 0
    %1146 = vmatpush1.bf16.msra.mxu0 0
    %1147 = vmatprep.subr.bf16.mxu0 0
    %1148 = vmatpush1.bf16.msra.mxu0 0
    %1149 = vmatprep.subr.bf16.mxu0 0
    %1150 = vmatpush1.bf16.msra.mxu0 0
    %1151 = vmatprep.subr.bf16.mxu0 0
    %1152 = vmatpush1.bf16.msra.mxu0 0
    %1153 = vmatprep.mubr.bf16.mxu0 0
    %1154 = vmatmul.mubr.bf16.gmra.mrb[0].mxu0 %v1119
    %v1155 = vpop.f32.mrb[0].mxu0
    %v1156 = vadd.f32 0.0, %v1155
    %v1157 = vpop.f32.mrb[0].mxu0
    %v1158 = vpop.f32.mrb[0].mxu0
    %v1159 = vpop.f32.mrb[0].mxu0
    %1160 = vdwg.mxu0
    %v1161 = vadd.f32 %v1116, %v1156
    %v1162 = vmul.f32 %v1161, 0.5
    %v1163 = vtanh.pop %v1162
    %v1164 = vmul.f32 %v1163, 0.5
    %v1165 = vadd.f32 %v1164, 0.5
    %v1166 = vtanh.pop %v1161
    %1168 = vrot.lane.b32.xlu0 %v1115, 32
    %v1169 = vpop.permute.xlu0 %1168
    %v1171 = vsub.f32 %v1166, %v1169
    %1173 = vrot.lane.b32.xlu0 %v1171, 96
    %v1174 = vpop.permute.xlu0 %1173
    %v1176 = vmul.f32 %v1165, %v1174
    %v1177 = vadd.f32 %v1115, %v1176
    %v1178 = vpack.c.bf16 %v1177, %v1177
    %v1180 = vsel %vm210, %v1178, 0
    %1182 = vmatprep.subr.bf16.mxu0 0
    %1183 = vmatpush1.bf16.msra.mxu0 %v284
    %1184 = vmatprep.subr.bf16.mxu0 0
    %1185 = vmatpush1.bf16.msra.mxu0 %v285
    %1186 = vmatprep.subr.bf16.mxu0 0
    %1187 = vmatpush1.bf16.msra.mxu0 0
    %1188 = vmatprep.subr.bf16.mxu0 0
    %1189 = vmatpush1.bf16.msra.mxu0 0
    %1190 = vmatprep.subr.bf16.mxu0 0
    %1191 = vmatpush1.bf16.msra.mxu0 0
    %1192 = vmatprep.subr.bf16.mxu0 0
    %1193 = vmatpush1.bf16.msra.mxu0 0
    %1194 = vmatprep.subr.bf16.mxu0 0
    %1195 = vmatpush1.bf16.msra.mxu0 0
    %1196 = vmatprep.subr.bf16.mxu0 0
    %1197 = vmatpush1.bf16.msra.mxu0 0
    %1198 = vmatprep.subr.bf16.mxu0 0
    %1199 = vmatpush1.bf16.msra.mxu0 0
    %1200 = vmatprep.subr.bf16.mxu0 0
    %1201 = vmatpush1.bf16.msra.mxu0 0
    %1202 = vmatprep.subr.bf16.mxu0 0
    %1203 = vmatpush1.bf16.msra.mxu0 0
    %1204 = vmatprep.subr.bf16.mxu0 0
    %1205 = vmatpush1.bf16.msra.mxu0 0
    %1206 = vmatprep.subr.bf16.mxu0 0
    %1207 = vmatpush1.bf16.msra.mxu0 0
    %1208 = vmatprep.subr.bf16.mxu0 0
    %1209 = vmatpush1.bf16.msra.mxu0 0
    %1210 = vmatprep.subr.bf16.mxu0 0
    %1211 = vmatpush1.bf16.msra.mxu0 0
    %1212 = vmatprep.subr.bf16.mxu0 0
    %1213 = vmatpush1.bf16.msra.mxu0 0
    %1214 = vmatprep.mubr.bf16.mxu0 0
    %1215 = vmatmul.mubr.bf16.gmra.mrb[0].mxu0 %v1180
    %v1216 = vpop.f32.mrb[0].mxu0
    %v1217 = vadd.f32 0.0, %v1216
    %v1218 = vpop.f32.mrb[0].mxu0
    %v1219 = vpop.f32.mrb[0].mxu0
    %v1220 = vpop.f32.mrb[0].mxu0
    %1221 = vdwg.mxu0
    %v1222 = vmul.f32 %v1217, 0.5
    %v1223 = vtanh.pop %v1222
    %v1224 = vmul.f32 %v1223, 0.5
    %v1225 = vadd.f32 %v1224, 0.5
    %1227 = vrot.lane.b32.xlu0 %v1177, 32
    %v1228 = vpop.permute.xlu0 %1227
    %v1230 = vsub.f32 %v1225, %v1228
    %1232 = vrot.lane.b32.xlu0 %v1230, 96
    %v1233 = vpop.permute.xlu0 %1232
    %v1235 = vmul.f32 %v1225, %v1233
    %v1236 = vadd.f32 %v1177, %v1235
    %v1237 = vpack.c.bf16 %v1236, %v1236
    %v1239 = vsel %vm210, %v1237, 0
    %1241 = vmatprep.subr.bf16.mxu0 %v370
    %1242 = vmatpush1.bf16.msra.mxu0 %v376
    %1243 = vmatprep.subr.bf16.mxu0 %v374
    %1244 = vmatpush1.bf16.msra.mxu0 %v377
    %1245 = vmatprep.subr.bf16.mxu0 0
    %1246 = vmatpush1.bf16.msra.mxu0 0
    %1247 = vmatprep.subr.bf16.mxu0 0
    %1248 = vmatpush1.bf16.msra.mxu0 0
    %1249 = vmatprep.subr.bf16.mxu0 0
    %1250 = vmatpush1.bf16.msra.mxu0 0
    %1251 = vmatprep.subr.bf16.mxu0 0
    %1252 = vmatpush1.bf16.msra.mxu0 0
    %1253 = vmatprep.subr.bf16.mxu0 0
    %1254 = vmatpush1.bf16.msra.mxu0 0
    %1255 = vmatprep.subr.bf16.mxu0 0
    %1256 = vmatpush1.bf16.msra.mxu0 0
    %1257 = vmatprep.subr.bf16.mxu0 0
    %1258 = vmatpush1.bf16.msra.mxu0 0
    %1259 = vmatprep.subr.bf16.mxu0 0
    %1260 = vmatpush1.bf16.msra.mxu0 0
    %1261 = vmatprep.subr.bf16.mxu0 0
    %1262 = vmatpush1.bf16.msra.mxu0 0
    %1263 = vmatprep.subr.bf16.mxu0 0
    %1264 = vmatpush1.bf16.msra.mxu0 0
    %1265 = vmatprep.subr.bf16.mxu0 0
    %1266 = vmatpush1.bf16.msra.mxu0 0
    %1267 = vmatprep.subr.bf16.mxu0 0
    %1268 = vmatpush1.bf16.msra.mxu0 0
    %1269 = vmatprep.subr.bf16.mxu0 0
    %1270 = vmatpush1.bf16.msra.mxu0 0
    %1271 = vmatprep.subr.bf16.mxu0 0
    %1272 = vmatpush1.bf16.msra.mxu0 0
    %1273 = vmatprep.mubr.bf16.mxu0 0
    %1274 = vmatmul.mubr.bf16.gmra.mrb[0].mxu0 %v1239
    %v1275 = vpop.f32.mrb[0].mxu0
    %v1276 = vadd.f32 0.0, %v1275
    %v1277 = vpop.f32.mrb[0].mxu0
    %v1278 = vadd.f32 0.0, %v1277
    %v1279 = vpop.f32.mrb[0].mxu0
    %v1280 = vpop.f32.mrb[0].mxu0
    %1281 = vdwg.mxu0
    %v1282 = vmul.f32 %v1276, 0.5
    %v1283 = vtanh.pop %v1282
    %v1284 = vmul.f32 %v1283, 0.5
    %v1285 = vadd.f32 %v1284, 0.5
    %1287 = vrot.lane.b32.xlu0 %v1236, 96
    %v1288 = vpop.permute.xlu0 %1287
    %v1290 = vsub.f32 %v1276, %v1288
    %1292 = vrot.lane.b32.xlu0 %v1290, 32
    %v1293 = vpop.permute.xlu0 %1292
    %v1295 = vmul.f32 %v1285, %v1293
    %v1296 = vadd.f32 %v1236, %v1295
    %v1297 = vmax.f32 %v1278, 0.0
    %v1298 = vsub.f32 %v1297, %v1236
    %1300 = vrot.lane.b32.xlu0 %v1298, 32
    %v1301 = vpop.permute.xlu0 %1300
    %v1303 = vmul.f32 %v1285, %v1301
    %1305 = vrot.lane.b32.xlu0 %v1303, 96
    %v1306 = vpop.permute.xlu0 %1305
    %v1308 = vadd.f32 %v1236, %v1306
    %1309 = vrot.lane.b32.xlu0 %v1236, 32
    %v1310 = vpop.permute.xlu0 %1309
    %v1312 = vsub.f32 %v1297, %v1310
    %1314 = vrot.lane.b32.xlu0 %v1312, 32
    %v1315 = vpop.permute.xlu0 %1314
    %v1317 = vmul.f32 %v1285, %v1315
    %1319 = vrot.lane.b32.xlu0 %v1317, 64
    %v1320 = vpop.permute.xlu0 %1319
    %v1322 = vadd.f32 %v1236, %v1320
    %v1323 = vpack.c.bf16 %v1308, %v1308
    %v1325 = vsel %vm210, %v1323, 0
    %1327 = vmatprep.subr.bf16.mxu0 0
    %1328 = vmatpush1.bf16.msra.mxu0 %v480
    %1329 = vmatprep.subr.bf16.mxu0 0
    %1330 = vmatpush1.bf16.msra.mxu0 %v481
    %1331 = vmatprep.subr.bf16.mxu0 0
    %1332 = vmatpush1.bf16.msra.mxu0 0
    %1333 = vmatprep.subr.bf16.mxu0 0
    %1334 = vmatpush1.bf16.msra.mxu0 0
    %1335 = vmatprep.subr.bf16.mxu0 0
    %1336 = vmatpush1.bf16.msra.mxu0 0
    %1337 = vmatprep.subr.bf16.mxu0 0
    %1338 = vmatpush1.bf16.msra.mxu0 0
    %1339 = vmatprep.subr.bf16.mxu0 0
    %1340 = vmatpush1.bf16.msra.mxu0 0
    %1341 = vmatprep.subr.bf16.mxu0 0
    %1342 = vmatpush1.bf16.msra.mxu0 0
    %1343 = vmatprep.subr.bf16.mxu0 0
    %1344 = vmatpush1.bf16.msra.mxu0 0
    %1345 = vmatprep.subr.bf16.mxu0 0
    %1346 = vmatpush1.bf16.msra.mxu0 0
    %1347 = vmatprep.subr.bf16.mxu0 0
    %1348 = vmatpush1.bf16.msra.mxu0 0
    %1349 = vmatprep.subr.bf16.mxu0 0
    %1350 = vmatpush1.bf16.msra.mxu0 0
    %1351 = vmatprep.subr.bf16.mxu0 0
    %1352 = vmatpush1.bf16.msra.mxu0 0
    %1353 = vmatprep.subr.bf16.mxu0 0
    %1354 = vmatpush1.bf16.msra.mxu0 0
    %1355 = vmatprep.subr.bf16.mxu0 0
    %1356 = vmatpush1.bf16.msra.mxu0 0
    %1357 = vmatprep.subr.bf16.mxu0 0
    %1358 = vmatpush1.bf16.msra.mxu0 0
    %1359 = vmatprep.mubr.bf16.mxu0 0
    %1360 = vmatmul.mubr.bf16.gmra.mrb[0].mxu0 %v1325
    %v1361 = vpop.f32.mrb[0].mxu0
    %v1362 = vadd.f32 0.0, %v1361
    %v1363 = vpop.f32.mrb[0].mxu0
    %v1364 = vpop.f32.mrb[0].mxu0
    %v1365 = vpop.f32.mrb[0].mxu0
    %1366 = vdwg.mxu0
    %v1367 = vmul.f32 %v1362, 0.5
    %v1368 = vtanh.pop %v1367
    %v1369 = vmul.f32 %v1368, 0.5
    %v1370 = vadd.f32 %v1369, 0.5
    %v1371 = vtanh.pop %v1362
    %1373 = vrot.lane.b32.xlu0 %v1308, 32
    %v1374 = vpop.permute.xlu0 %1373
    %v1376 = vsub.f32 %v1371, %v1374
    %1378 = vrot.lane.b32.xlu0 %v1376, 96
    %v1379 = vpop.permute.xlu0 %1378
    %v1381 = vmul.f32 %v1370, %v1379
    %v1382 = vadd.f32 %v1308, %v1381
    %v1383 = vpack.c.bf16 %v1322, %v1322
    %v1385 = vsel %vm210, %v1383, 0
    %1387 = vmatprep.subr.bf16.mxu0 0
    %1388 = vmatpush1.bf16.msra.mxu0 %v545
    %1389 = vmatprep.subr.bf16.mxu0 0
    %1390 = vmatpush1.bf16.msra.mxu0 %v547
    %1391 = vmatprep.subr.bf16.mxu0 0
    %1392 = vmatpush1.bf16.msra.mxu0 0
    %1393 = vmatprep.subr.bf16.mxu0 0
    %1394 = vmatpush1.bf16.msra.mxu0 0
    %1395 = vmatprep.subr.bf16.mxu0 0
    %1396 = vmatpush1.bf16.msra.mxu0 0
    %1397 = vmatprep.subr.bf16.mxu0 0
    %1398 = vmatpush1.bf16.msra.mxu0 0
    %1399 = vmatprep.subr.bf16.mxu0 0
    %1400 = vmatpush1.bf16.msra.mxu0 0
    %1401 = vmatprep.subr.bf16.mxu0 0
    %1402 = vmatpush1.bf16.msra.mxu0 0
    %1403 = vmatprep.subr.bf16.mxu0 0
    %1404 = vmatpush1.bf16.msra.mxu0 0
    %1405 = vmatprep.subr.bf16.mxu0 0
    %1406 = vmatpush1.bf16.msra.mxu0 0
    %1407 = vmatprep.subr.bf16.mxu0 0
    %1408 = vmatpush1.bf16.msra.mxu0 0
    %1409 = vmatprep.subr.bf16.mxu0 0
    %1410 = vmatpush1.bf16.msra.mxu0 0
    %1411 = vmatprep.subr.bf16.mxu0 0
    %1412 = vmatpush1.bf16.msra.mxu0 0
    %1413 = vmatprep.subr.bf16.mxu0 0
    %1414 = vmatpush1.bf16.msra.mxu0 0
    %1415 = vmatprep.subr.bf16.mxu0 0
    %1416 = vmatpush1.bf16.msra.mxu0 0
    %1417 = vmatprep.subr.bf16.mxu0 0
    %1418 = vmatpush1.bf16.msra.mxu0 0
    %1419 = vmatprep.mubr.bf16.mxu0 0
    %1420 = vmatmul.mubr.bf16.gmra.mrb[0].mxu0 %v1385
    %v1421 = vpop.f32.mrb[0].mxu0
    %v1422 = vadd.f32 0.0, %v1421
    %v1423 = vpop.f32.mrb[0].mxu0
    %v1424 = vpop.f32.mrb[0].mxu0
    %v1425 = vpop.f32.mrb[0].mxu0
    %1426 = vdwg.mxu0
    %v1427 = vmul.f32 %v1422, 0.5
    %v1428 = vtanh.pop %v1427
    %v1429 = vmul.f32 %v1428, 0.5
    %v1430 = vadd.f32 %v1429, 0.5
    %v1431 = vtanh.pop %v1422
    %1433 = vrot.lane.b32.xlu0 %v1322, 32
    %v1434 = vpop.permute.xlu0 %1433
    %v1436 = vsub.f32 %v1431, %v1434
    %1438 = vrot.lane.b32.xlu0 %v1436, 96
    %v1439 = vpop.permute.xlu0 %1438
    %v1441 = vmul.f32 %v1430, %v1439
    %v1442 = vadd.f32 %v1322, %v1441
    %v1443 = vpack.c.bf16 %v1382, %v1382
    %v1445 = vsel %vm210, %v1443, 0
    %1447 = vmatprep.subr.bf16.mxu0 0
    %1448 = vmatpush1.bf16.msra.mxu0 %v622
    %1449 = vmatprep.subr.bf16.mxu0 0
    %1450 = vmatpush1.bf16.msra.mxu0 %v623
    %1451 = vmatprep.subr.bf16.mxu0 0
    %1452 = vmatpush1.bf16.msra.mxu0 0
    %1453 = vmatprep.subr.bf16.mxu0 0
    %1454 = vmatpush1.bf16.msra.mxu0 0
    %1455 = vmatprep.subr.bf16.mxu0 0
    %1456 = vmatpush1.bf16.msra.mxu0 0
    %1457 = vmatprep.subr.bf16.mxu0 0
    %1458 = vmatpush1.bf16.msra.mxu0 0
    %1459 = vmatprep.subr.bf16.mxu0 0
    %1460 = vmatpush1.bf16.msra.mxu0 0
    %1461 = vmatprep.subr.bf16.mxu0 0
    %1462 = vmatpush1.bf16.msra.mxu0 0
    %1463 = vmatprep.subr.bf16.mxu0 0
    %1464 = vmatpush1.bf16.msra.mxu0 0
    %1465 = vmatprep.subr.bf16.mxu0 0
    %1466 = vmatpush1.bf16.msra.mxu0 0
    %1467 = vmatprep.subr.bf16.mxu0 0
    %1468 = vmatpush1.bf16.msra.mxu0 0
    %1469 = vmatprep.subr.bf16.mxu0 0
    %1470 = vmatpush1.bf16.msra.mxu0 0
    %1471 = vmatprep.subr.bf16.mxu0 0
    %1472 = vmatpush1.bf16.msra.mxu0 0
    %1473 = vmatprep.subr.bf16.mxu0 0
    %1474 = vmatpush1.bf16.msra.mxu0 0
    %1475 = vmatprep.subr.bf16.mxu0 0
    %1476 = vmatpush1.bf16.msra.mxu0 0
    %1477 = vmatprep.subr.bf16.mxu0 0
    %1478 = vmatpush1.bf16.msra.mxu0 0
    %1479 = vmatprep.mubr.bf16.mxu0 0
    %1480 = vmatmul.mubr.bf16.gmra.mrb[0].mxu0 %v1445
    %v1481 = vpop.f32.mrb[0].mxu0
    %v1482 = vadd.f32 0.0, %v1481
    %v1483 = vpop.f32.mrb[0].mxu0
    %v1484 = vpop.f32.mrb[0].mxu0
    %v1485 = vpop.f32.mrb[0].mxu0
    %1486 = vdwg.mxu0
    %v1487 = vmul.f32 %v1482, 0.5
    %v1488 = vtanh.pop %v1487
    %v1489 = vmul.f32 %v1488, 0.5
    %v1490 = vadd.f32 %v1489, 0.5
    %v1491 = vmax.f32 %v1482, 0.0
    %1493 = vrot.lane.b32.xlu0 %v1382, 64
    %v1494 = vpop.permute.xlu0 %1493
    %v1496 = vsub.f32 %v1491, %v1494
    %1498 = vrot.lane.b32.xlu0 %v1496, 64
    %v1499 = vpop.permute.xlu0 %1498
    %v1501 = vmul.f32 %v1490, %v1499
    %v1502 = vadd.f32 %v1382, %v1501
    %1503 = vrot.lane.b32.xlu0 %v1382, 96
    %v1504 = vpop.permute.xlu0 %1503
    %v1506 = vsub.f32 %v1490, %v1504
    %1508 = vrot.lane.b32.xlu0 %v1506, 64
    %v1509 = vpop.permute.xlu0 %1508
    %v1511 = vmul.f32 %v1490, %v1509
    %1513 = vrot.lane.b32.xlu0 %v1511, 96
    %v1514 = vpop.permute.xlu0 %1513
    %v1516 = vadd.f32 %v1382, %v1514
    %v1517 = vadd.f32 %v1236, %v1308
    %v1518 = vadd.f32 %v1517, %v1322
    %v1519 = vadd.f32 %v1518, %v1296
    %v1520 = vadd.f32 %v1519, %v1382
    %v1521 = vadd.f32 %v1520, %v1516
    %v1522 = vadd.f32 %v1521, %v1442
    %v1523 = vadd.f32 %v1522, %v1502
    %v1524 = vmul.f32 %v1523, 0.125
    %v1525 = vld [vmem:[#allocation2 + $0x18] sm:$0xff]
    %v1526 = vpack.c.bf16 %v1524, %v1524
    %v1528 = vsel %vm210, %v1526, 0
    %1530 = vmatprep.subr.bf16.mxu0 0
    %1531 = vmatpush1.bf16.msra.mxu0 %v206
    %1532 = vmatprep.subr.bf16.mxu0 0
    %1533 = vmatpush1.bf16.msra.mxu0 %v207
    %1534 = vmatprep.subr.bf16.mxu0 0
    %1535 = vmatpush1.bf16.msra.mxu0 0
    %1536 = vmatprep.subr.bf16.mxu0 0
    %1537 = vmatpush1.bf16.msra.mxu0 0
    %1538 = vmatprep.subr.bf16.mxu0 0
    %1539 = vmatpush1.bf16.msra.mxu0 0
    %1540 = vmatprep.subr.bf16.mxu0 0
    %1541 = vmatpush1.bf16.msra.mxu0 0
    %1542 = vmatprep.subr.bf16.mxu0 0
    %1543 = vmatpush1.bf16.msra.mxu0 0
    %1544 = vmatprep.subr.bf16.mxu0 0
    %1545 = vmatpush1.bf16.msra.mxu0 0
    %1546 = vmatprep.subr.bf16.mxu0 0
    %1547 = vmatpush1.bf16.msra.mxu0 0
    %1548 = vmatprep.subr.bf16.mxu0 0
    %1549 = vmatpush1.bf16.msra.mxu0 0
    %1550 = vmatprep.subr.bf16.mxu0 0
    %1551 = vmatpush1.bf16.msra.mxu0 0
    %1552 = vmatprep.subr.bf16.mxu0 0
    %1553 = vmatpush1.bf16.msra.mxu0 0
    %1554 = vmatprep.subr.bf16.mxu0 0
    %1555 = vmatpush1.bf16.msra.mxu0 0
    %1556 = vmatprep.subr.bf16.mxu0 0
    %1557 = vmatpush1.bf16.msra.mxu0 0
    %1558 = vmatprep.subr.bf16.mxu0 0
    %1559 = vmatpush1.bf16.msra.mxu0 0
    %1560 = vmatprep.subr.bf16.mxu0 0
    %1561 = vmatpush1.bf16.msra.mxu0 0
    %1562 = vmatprep.mubr.bf16.mxu0 0
    %1563 = vmatmul.mubr.bf16.gmra.mrb[0].mxu0 %v1528
    %v1564 = vpop.f32.mrb[0].mxu0
    %v1565 = vadd.f32 0.0, %v1564
    %v1566 = vpop.f32.mrb[0].mxu0
    %v1567 = vpop.f32.mrb[0].mxu0
    %v1568 = vpop.f32.mrb[0].mxu0
    %1569 = vdwg.mxu0
    %v1570 = vadd.f32 %v1525, %v1565
    %v1571 = vmul.f32 %v1570, 0.5
    %v1572 = vtanh.pop %v1571
    %v1573 = vmul.f32 %v1572, 0.5
    %v1574 = vadd.f32 %v1573, 0.5
    %v1575 = vtanh.pop %v1570
    %1577 = vrot.lane.b32.xlu0 %v1524, 32
    %v1578 = vpop.permute.xlu0 %1577
    %v1580 = vsub.f32 %v1575, %v1578
    %1582 = vrot.lane.b32.xlu0 %v1580, 96
    %v1583 = vpop.permute.xlu0 %1582
    %v1585 = vmul.f32 %v1574, %v1583
    %v1586 = vadd.f32 %v1524, %v1585
    %v1587 = vpack.c.bf16 %v1586, %v1586
    %v1589 = vsel %vm210, %v1587, 0
    %1591 = vmatprep.subr.bf16.mxu0 0
    %1592 = vmatpush1.bf16.msra.mxu0 %v284
    %1593 = vmatprep.subr.bf16.mxu0 0
    %1594 = vmatpush1.bf16.msra.mxu0 %v285
    %1595 = vmatprep.subr.bf16.mxu0 0
    %1596 = vmatpush1.bf16.msra.mxu0 0
    %1597 = vmatprep.subr.bf16.mxu0 0
    %1598 = vmatpush1.bf16.msra.mxu0 0
    %1599 = vmatprep.subr.bf16.mxu0 0
    %1600 = vmatpush1.bf16.msra.mxu0 0
    %1601 = vmatprep.subr.bf16.mxu0 0
    %1602 = vmatpush1.bf16.msra.mxu0 0
    %1603 = vmatprep.subr.bf16.mxu0 0
    %1604 = vmatpush1.bf16.msra.mxu0 0
    %1605 = vmatprep.subr.bf16.mxu0 0
    %1606 = vmatpush1.bf16.msra.mxu0 0
    %1607 = vmatprep.subr.bf16.mxu0 0
    %1608 = vmatpush1.bf16.msra.mxu0 0
    %1609 = vmatprep.subr.bf16.mxu0 0
    %1610 = vmatpush1.bf16.msra.mxu0 0
    %1611 = vmatprep.subr.bf16.mxu0 0
    %1612 = vmatpush1.bf16.msra.mxu0 0
    %1613 = vmatprep.subr.bf16.mxu0 0
    %1614 = vmatpush1.bf16.msra.mxu0 0
    %1615 = vmatprep.subr.bf16.mxu0 0
    %1616 = vmatpush1.bf16.msra.mxu0 0
    %1617 = vmatprep.subr.bf16.mxu0 0
    %1618 = vmatpush1.bf16.msra.mxu0 0
    %1619 = vmatprep.subr.bf16.mxu0 0
    %1620 = vmatpush1.bf16.msra.mxu0 0
    %1621 = vmatprep.subr.bf16.mxu0 0
    %1622 = vmatpush1.bf16.msra.mxu0 0
    %1623 = vmatprep.mubr.bf16.mxu0 0
    %1624 = vmatmul.mubr.bf16.gmra.mrb[0].mxu0 %v1589
    %v1625 = vpop.f32.mrb[0].mxu0
    %v1626 = vadd.f32 0.0, %v1625
    %v1627 = vpop.f32.mrb[0].mxu0
    %v1628 = vpop.f32.mrb[0].mxu0
    %v1629 = vpop.f32.mrb[0].mxu0
    %1630 = vdwg.mxu0
    %v1631 = vmul.f32 %v1626, 0.5
    %v1632 = vtanh.pop %v1631
    %v1633 = vmul.f32 %v1632, 0.5
    %v1634 = vadd.f32 %v1633, 0.5
    %1636 = vrot.lane.b32.xlu0 %v1586, 32
    %v1637 = vpop.permute.xlu0 %1636
    %v1639 = vsub.f32 %v1634, %v1637
    %1641 = vrot.lane.b32.xlu0 %v1639, 96
    %v1642 = vpop.permute.xlu0 %1641
    %v1644 = vmul.f32 %v1634, %v1642
    %v1645 = vadd.f32 %v1586, %v1644
    %v1646 = vpack.c.bf16 %v1645, %v1645
    %v1648 = vsel %vm210, %v1646, 0
    %1650 = vmatprep.subr.bf16.mxu0 %v370
    %1651 = vmatpush1.bf16.msra.mxu0 %v376
    %1652 = vmatprep.subr.bf16.mxu0 %v374
    %1653 = vmatpush1.bf16.msra.mxu0 %v377
    %1654 = vmatprep.subr.bf16.mxu0 0
    %1655 = vmatpush1.bf16.msra.mxu0 0
    %1656 = vmatprep.subr.bf16.mxu0 0
    %1657 = vmatpush1.bf16.msra.mxu0 0
    %1658 = vmatprep.subr.bf16.mxu0 0
    %1659 = vmatpush1.bf16.msra.mxu0 0
    %1660 = vmatprep.subr.bf16.mxu0 0
    %1661 = vmatpush1.bf16.msra.mxu0 0
    %1662 = vmatprep.subr.bf16.mxu0 0
    %1663 = vmatpush1.bf16.msra.mxu0 0
    %1664 = vmatprep.subr.bf16.mxu0 0
    %1665 = vmatpush1.bf16.msra.mxu0 0
    %1666 = vmatprep.subr.bf16.mxu0 0
    %1667 = vmatpush1.bf16.msra.mxu0 0
    %1668 = vmatprep.subr.bf16.mxu0 0
    %1669 = vmatpush1.bf16.msra.mxu0 0
    %1670 = vmatprep.subr.bf16.mxu0 0
    %1671 = vmatpush1.bf16.msra.mxu0 0
    %1672 = vmatprep.subr.bf16.mxu0 0
    %1673 = vmatpush1.bf16.msra.mxu0 0
    %1674 = vmatprep.subr.bf16.mxu0 0
    %1675 = vmatpush1.bf16.msra.mxu0 0
    %1676 = vmatprep.subr.bf16.mxu0 0
    %1677 = vmatpush1.bf16.msra.mxu0 0
    %1678 = vmatprep.subr.bf16.mxu0 0
    %1679 = vmatpush1.bf16.msra.mxu0 0
    %1680 = vmatprep.subr.bf16.mxu0 0
    %1681 = vmatpush1.bf16.msra.mxu0 0
    %1682 = vmatprep.mubr.bf16.mxu0 0
    %1683 = vmatmul.mubr.bf16.gmra.mrb[0].mxu0 %v1648
    %v1684 = vpop.f32.mrb[0].mxu0
    %v1685 = vadd.f32 0.0, %v1684
    %v1686 = vpop.f32.mrb[0].mxu0
    %v1687 = vadd.f32 0.0, %v1686
    %v1688 = vpop.f32.mrb[0].mxu0
    %v1689 = vpop.f32.mrb[0].mxu0
    %1690 = vdwg.mxu0
    %v1691 = vmul.f32 %v1685, 0.5
    %v1692 = vtanh.pop %v1691
    %v1693 = vmul.f32 %v1692, 0.5
    %v1694 = vadd.f32 %v1693, 0.5
    %1696 = vrot.lane.b32.xlu0 %v1645, 96
    %v1697 = vpop.permute.xlu0 %1696
    %v1699 = vsub.f32 %v1685, %v1697
    %1701 = vrot.lane.b32.xlu0 %v1699, 32
    %v1702 = vpop.permute.xlu0 %1701
    %v1704 = vmul.f32 %v1694, %v1702
    %v1705 = vadd.f32 %v1645, %v1704
    %v1706 = vmax.f32 %v1687, 0.0
    %v1707 = vsub.f32 %v1706, %v1645
    %1709 = vrot.lane.b32.xlu0 %v1707, 32
    %v1710 = vpop.permute.xlu0 %1709
    %v1712 = vmul.f32 %v1694, %v1710
    %1714 = vrot.lane.b32.xlu0 %v1712, 96
    %v1715 = vpop.permute.xlu0 %1714
    %v1717 = vadd.f32 %v1645, %v1715
    %1718 = vrot.lane.b32.xlu0 %v1645, 32
    %v1719 = vpop.permute.xlu0 %1718
    %v1721 = vsub.f32 %v1706, %v1719
    %1723 = vrot.lane.b32.xlu0 %v1721, 32
    %v1724 = vpop.permute.xlu0 %1723
    %v1726 = vmul.f32 %v1694, %v1724
    %1728 = vrot.lane.b32.xlu0 %v1726, 64
    %v1729 = vpop.permute.xlu0 %1728
    %v1731 = vadd.f32 %v1645, %v1729
    %v1732 = vpack.c.bf16 %v1717, %v1717
    %v1734 = vsel %vm210, %v1732, 0
    %1736 = vmatprep.subr.bf16.mxu0 0
    %1737 = vmatpush1.bf16.msra.mxu0 %v480
    %1738 = vmatprep.subr.bf16.mxu0 0
    %1739 = vmatpush1.bf16.msra.mxu0 %v481
    %1740 = vmatprep.subr.bf16.mxu0 0
    %1741 = vmatpush1.bf16.msra.mxu0 0
    %1742 = vmatprep.subr.bf16.mxu0 0
    %1743 = vmatpush1.bf16.msra.mxu0 0
    %1744 = vmatprep.subr.bf16.mxu0 0
    %1745 = vmatpush1.bf16.msra.mxu0 0
    %1746 = vmatprep.subr.bf16.mxu0 0
    %1747 = vmatpush1.bf16.msra.mxu0 0
    %1748 = vmatprep.subr.bf16.mxu0 0
    %1749 = vmatpush1.bf16.msra.mxu0 0
    %1750 = vmatprep.subr.bf16.mxu0 0
    %1751 = vmatpush1.bf16.msra.mxu0 0
    %1752 = vmatprep.subr.bf16.mxu0 0
    %1753 = vmatpush1.bf16.msra.mxu0 0
    %1754 = vmatprep.subr.bf16.mxu0 0
    %1755 = vmatpush1.bf16.msra.mxu0 0
    %1756 = vmatprep.subr.bf16.mxu0 0
    %1757 = vmatpush1.bf16.msra.mxu0 0
    %1758 = vmatprep.subr.bf16.mxu0 0
    %1759 = vmatpush1.bf16.msra.mxu0 0
    %1760 = vmatprep.subr.bf16.mxu0 0
    %1761 = vmatpush1.bf16.msra.mxu0 0
    %1762 = vmatprep.subr.bf16.mxu0 0
    %1763 = vmatpush1.bf16.msra.mxu0 0
    %1764 = vmatprep.subr.bf16.mxu0 0
    %1765 = vmatpush1.bf16.msra.mxu0 0
    %1766 = vmatprep.subr.bf16.mxu0 0
    %1767 = vmatpush1.bf16.msra.mxu0 0
    %1768 = vmatprep.mubr.bf16.mxu0 0
    %1769 = vmatmul.mubr.bf16.gmra.mrb[0].mxu0 %v1734
    %v1770 = vpop.f32.mrb[0].mxu0
    %v1771 = vadd.f32 0.0, %v1770
    %v1772 = vpop.f32.mrb[0].mxu0
    %v1773 = vpop.f32.mrb[0].mxu0
    %v1774 = vpop.f32.mrb[0].mxu0
    %1775 = vdwg.mxu0
    %v1776 = vmul.f32 %v1771, 0.5
    %v1777 = vtanh.pop %v1776
    %v1778 = vmul.f32 %v1777, 0.5
    %v1779 = vadd.f32 %v1778, 0.5
    %v1780 = vtanh.pop %v1771
    %1782 = vrot.lane.b32.xlu0 %v1717, 32
    %v1783 = vpop.permute.xlu0 %1782
    %v1785 = vsub.f32 %v1780, %v1783
    %1787 = vrot.lane.b32.xlu0 %v1785, 96
    %v1788 = vpop.permute.xlu0 %1787
    %v1790 = vmul.f32 %v1779, %v1788
    %v1791 = vadd.f32 %v1717, %v1790
    %v1792 = vpack.c.bf16 %v1731, %v1731
    %v1794 = vsel %vm210, %v1792, 0
    %1796 = vmatprep.subr.bf16.mxu0 0
    %1797 = vmatpush1.bf16.msra.mxu0 %v545
    %1798 = vmatprep.subr.bf16.mxu0 0
    %1799 = vmatpush1.bf16.msra.mxu0 %v547
    %1800 = vmatprep.subr.bf16.mxu0 0
    %1801 = vmatpush1.bf16.msra.mxu0 0
    %1802 = vmatprep.subr.bf16.mxu0 0
    %1803 = vmatpush1.bf16.msra.mxu0 0
    %1804 = vmatprep.subr.bf16.mxu0 0
    %1805 = vmatpush1.bf16.msra.mxu0 0
    %1806 = vmatprep.subr.bf16.mxu0 0
    %1807 = vmatpush1.bf16.msra.mxu0 0
    %1808 = vmatprep.subr.bf16.mxu0 0
    %1809 = vmatpush1.bf16.msra.mxu0 0
    %1810 = vmatprep.subr.bf16.mxu0 0
    %1811 = vmatpush1.bf16.msra.mxu0 0
    %1812 = vmatprep.subr.bf16.mxu0 0
    %1813 = vmatpush1.bf16.msra.mxu0 0
    %1814 = vmatprep.subr.bf16.mxu0 0
    %1815 = vmatpush1.bf16.msra.mxu0 0
    %1816 = vmatprep.subr.bf16.mxu0 0
    %1817 = vmatpush1.bf16.msra.mxu0 0
    %1818 = vmatprep.subr.bf16.mxu0 0
    %1819 = vmatpush1.bf16.msra.mxu0 0
    %1820 = vmatprep.subr.bf16.mxu0 0
    %1821 = vmatpush1.bf16.msra.mxu0 0
    %1822 = vmatprep.subr.bf16.mxu0 0
    %1823 = vmatpush1.bf16.msra.mxu0 0
    %1824 = vmatprep.subr.bf16.mxu0 0
    %1825 = vmatpush1.bf16.msra.mxu0 0
    %1826 = vmatprep.subr.bf16.mxu0 0
    %1827 = vmatpush1.bf16.msra.mxu0 0
    %1828 = vmatprep.mubr.bf16.mxu0 0
    %1829 = vmatmul.mubr.bf16.gmra.mrb[0].mxu0 %v1794
    %v1830 = vpop.f32.mrb[0].mxu0
    %v1831 = vadd.f32 0.0, %v1830
    %v1832 = vpop.f32.mrb[0].mxu0
    %v1833 = vpop.f32.mrb[0].mxu0
    %v1834 = vpop.f32.mrb[0].mxu0
    %1835 = vdwg.mxu0
    %v1836 = vmul.f32 %v1831, 0.5
    %v1837 = vtanh.pop %v1836
    %v1838 = vmul.f32 %v1837, 0.5
    %v1839 = vadd.f32 %v1838, 0.5
    %v1840 = vtanh.pop %v1831
    %1842 = vrot.lane.b32.xlu0 %v1731, 32
    %v1843 = vpop.permute.xlu0 %1842
    %v1845 = vsub.f32 %v1840, %v1843
    %1847 = vrot.lane.b32.xlu0 %v1845, 96
    %v1848 = vpop.permute.xlu0 %1847
    %v1850 = vmul.f32 %v1839, %v1848
    %v1851 = vadd.f32 %v1731, %v1850
    %v1852 = vpack.c.bf16 %v1791, %v1791
    %v1854 = vsel %vm210, %v1852, 0
    %1856 = vmatprep.subr.bf16.mxu0 0
    %1857 = vmatpush1.bf16.msra.mxu0 %v622
    %1858 = vmatprep.subr.bf16.mxu0 0
    %1859 = vmatpush1.bf16.msra.mxu0 %v623
    %1860 = vmatprep.subr.bf16.mxu0 0
    %1861 = vmatpush1.bf16.msra.mxu0 0
    %1862 = vmatprep.subr.bf16.mxu0 0
    %1863 = vmatpush1.bf16.msra.mxu0 0
    %1864 = vmatprep.subr.bf16.mxu0 0
    %1865 = vmatpush1.bf16.msra.mxu0 0
    %1866 = vmatprep.subr.bf16.mxu0 0
    %1867 = vmatpush1.bf16.msra.mxu0 0
    %1868 = vmatprep.subr.bf16.mxu0 0
    %1869 = vmatpush1.bf16.msra.mxu0 0
    %1870 = vmatprep.subr.bf16.mxu0 0
    %1871 = vmatpush1.bf16.msra.mxu0 0
    %1872 = vmatprep.subr.bf16.mxu0 0
    %1873 = vmatpush1.bf16.msra.mxu0 0
    %1874 = vmatprep.subr.bf16.mxu0 0
    %1875 = vmatpush1.bf16.msra.mxu0 0
    %1876 = vmatprep.subr.bf16.mxu0 0
    %1877 = vmatpush1.bf16.msra.mxu0 0
    %1878 = vmatprep.subr.bf16.mxu0 0
    %1879 = vmatpush1.bf16.msra.mxu0 0
    %1880 = vmatprep.subr.bf16.mxu0 0
    %1881 = vmatpush1.bf16.msra.mxu0 0
    %1882 = vmatprep.subr.bf16.mxu0 0
    %1883 = vmatpush1.bf16.msra.mxu0 0
    %1884 = vmatprep.subr.bf16.mxu0 0
    %1885 = vmatpush1.bf16.msra.mxu0 0
    %1886 = vmatprep.subr.bf16.mxu0 0
    %1887 = vmatpush1.bf16.msra.mxu0 0
    %1888 = vmatprep.mubr.bf16.mxu0 0
    %1889 = vmatmul.mubr.bf16.gmra.mrb[0].mxu0 %v1854
    %v1890 = vpop.f32.mrb[0].mxu0
    %v1891 = vadd.f32 0.0, %v1890
    %v1892 = vpop.f32.mrb[0].mxu0
    %v1893 = vpop.f32.mrb[0].mxu0
    %v1894 = vpop.f32.mrb[0].mxu0
    %1895 = vdwg.mxu0
    %v1896 = vmul.f32 %v1891, 0.5
    %v1897 = vtanh.pop %v1896
    %v1898 = vmul.f32 %v1897, 0.5
    %v1899 = vadd.f32 %v1898, 0.5
    %v1900 = vmax.f32 %v1891, 0.0
    %1902 = vrot.lane.b32.xlu0 %v1791, 64
    %v1903 = vpop.permute.xlu0 %1902
    %v1905 = vsub.f32 %v1900, %v1903
    %1907 = vrot.lane.b32.xlu0 %v1905, 64
    %v1908 = vpop.permute.xlu0 %1907
    %v1910 = vmul.f32 %v1899, %v1908
    %v1911 = vadd.f32 %v1791, %v1910
    %1912 = vrot.lane.b32.xlu0 %v1791, 96
    %v1913 = vpop.permute.xlu0 %1912
    %v1915 = vsub.f32 %v1899, %v1913
    %1917 = vrot.lane.b32.xlu0 %v1915, 64
    %v1918 = vpop.permute.xlu0 %1917
    %v1920 = vmul.f32 %v1899, %v1918
    %1922 = vrot.lane.b32.xlu0 %v1920, 96
    %v1923 = vpop.permute.xlu0 %1922
    %v1925 = vadd.f32 %v1791, %v1923
    %v1926 = vadd.f32 %v1645, %v1717
    %v1927 = vadd.f32 %v1926, %v1731
    %v1928 = vadd.f32 %v1927, %v1705
    %v1929 = vadd.f32 %v1928, %v1791
    %v1930 = vadd.f32 %v1929, %v1925
    %v1931 = vadd.f32 %v1930, %v1851
    %v1932 = vadd.f32 %v1931, %v1911
    %v1933 = vmul.f32 %v1932, 0.125
    %v1934 = vpack.c.bf16 %v1933, %v1933
    %v1935 = vld [vmem:[%s5] sm:$0xf]
    %v1936 = vld [vmem:[%s5 + $0x4] sm:$0xf]
    %v1937 = vld [vmem:[%s5 + $0x8] sm:$0xf]
    %v1938 = vld [vmem:[%s5 + $0xc] sm:$0xf]
    %v1939 = vld [vmem:[#allocation7] sm:$0x1]
    %v1941 = vlaneseq
    %v1942 = vshrl.u32 %v1941, 7
    %v1943 = vsub.s32 0, %v1942
    %v1944 = vrot.slane %v1939, %v1943
    %v1950 = vunpack.c.l.b16 %v1935
    %v1951 = vunpack.c.l.b16 %v1936
    %v1952 = vunpack.c.l.b16 %v1937
    %v1953 = vunpack.c.l.b16 %v1938
    %v1954 = vpack.c.b16 %v1951, %v1950
    %v1955 = vpack.c.b16 %v1953, %v1952
    %v1959 = vsel %vm210, %v1934, 0
    %1961 = vmatprep.subr.bf16.mxu0 0
    %1962 = vmatpush1.bf16.msra.mxu0 %v1954
    %1963 = vmatprep.subr.bf16.mxu0 0
    %1964 = vmatpush1.bf16.msra.mxu0 %v1955
    %1965 = vmatprep.subr.bf16.mxu0 0
    %1966 = vmatpush1.bf16.msra.mxu0 0
    %1967 = vmatprep.subr.bf16.mxu0 0
    %1968 = vmatpush1.bf16.msra.mxu0 0
    %1969 = vmatprep.subr.bf16.mxu0 0
    %1970 = vmatpush1.bf16.msra.mxu0 0
    %1971 = vmatprep.subr.bf16.mxu0 0
    %1972 = vmatpush1.bf16.msra.mxu0 0
    %1973 = vmatprep.subr.bf16.mxu0 0
    %1974 = vmatpush1.bf16.msra.mxu0 0
    %1975 = vmatprep.subr.bf16.mxu0 0
    %1976 = vmatpush1.bf16.msra.mxu0 0
    %1977 = vmatprep.subr.bf16.mxu0 0
    %1978 = vmatpush1.bf16.msra.mxu0 0
    %1979 = vmatprep.subr.bf16.mxu0 0
    %1980 = vmatpush1.bf16.msra.mxu0 0
    %1981 = vmatprep.subr.bf16.mxu0 0
    %1982 = vmatpush1.bf16.msra.mxu0 0
    %1983 = vmatprep.subr.bf16.mxu0 0
    %1984 = vmatpush1.bf16.msra.mxu0 0
    %1985 = vmatprep.subr.bf16.mxu0 0
    %1986 = vmatpush1.bf16.msra.mxu0 0
    %1987 = vmatprep.subr.bf16.mxu0 0
    %1988 = vmatpush1.bf16.msra.mxu0 0
    %1989 = vmatprep.subr.bf16.mxu0 0
    %1990 = vmatpush1.bf16.msra.mxu0 0
    %1991 = vmatprep.subr.bf16.mxu0 0
    %1992 = vmatpush1.bf16.msra.mxu0 0
    %1993 = vmatprep.mubr.bf16.mxu0 0
    %1994 = vmatmul.mubr.bf16.gmra.mrb[0].mxu0 %v1959
    %v1995 = vpop.f32.mrb[0].mxu0
    %v1996 = vadd.f32 %v1944, %v1995
    %v1997 = vpop.f32.mrb[0].mxu0
    %v1998 = vpop.f32.mrb[0].mxu0
    %v1999 = vpop.f32.mrb[0].mxu0
    %2000 = vdwg.mxu0
    %vm2001 = vcmask 31744
    %2002 = vst.msk [vmem:[%s7] sm:$0xff] %vm2001, %v1996
    %v2003 = vsel %vm2001, %v1996, -inf
    %2004 = vmax.xlane.f32.xlu0 %v2003
    %v2005 = vpop.xlane.xlu0 %2004
    %v2006 = vsub.f32 %v1996, %v2005
    %v2007 = vmul.f32 %v2006, 1.442695
    %v2008 = vpow.pop %v2007
    %v2009 = vsel %vm2001, %v2008, 0.0
    %2010 = vadd.xlane.f32.xlu0 %v2009
    %v2011 = vpop.xlane.xlu0 %2010
    %v2012 = vrcp.pop %v2011
    %v2013 = vmul.f32 %v2008, %v2012
    %2014 = vst.msk [vmem:[%s8] sm:$0xff] %vm2001, %v2013
    // Predicated region
    $region42: #{rnn_model_forward.1} parent=1 // pred_check
      _
    $region43: #{rnn_model_forward.1} parent=1 // pred_check_branch
      %2016 = sbr.rel (0) target = $region45
    $region44: #{rnn_model_forward.1} parent=1 // pred_region
      _
    $region45: #{rnn_model_forward.1} parent=1 // pred_fallthru
      _
    // Predicated region
    $region46: #{rnn_model_forward.1} parent=1 // pred_check
      _
    $region47: #{rnn_model_forward.1} parent=1 // pred_check_branch
      %2018 = sbr.rel (0) target = $region49
    $region48: #{rnn_model_forward.1} parent=1 // pred_region
      _
    $region49: #{rnn_model_forward.1} parent=1 // pred_fallthru
      _
    // Predicated region
    $region50: #{rnn_model_forward.1} parent=1 // pred_check
      _
    $region51: #{rnn_model_forward.1} parent=1 // pred_check_branch
      %2020 = sbr.rel (0) target = $region53
    $region52: #{rnn_model_forward.1} parent=1 // pred_region
      _
    $region53: #{rnn_model_forward.1} parent=1 // pred_fallthru
      _
    // Predicated region
    $region54: #{rnn_model_forward.1} parent=1 // pred_check
      _
    $region55: #{rnn_model_forward.1} parent=1 // pred_check_branch
      %2022 = sbr.rel (0) target = $region57
    $region56: #{rnn_model_forward.1} parent=1 // pred_region
      _
    $region57: #{rnn_model_forward.1} parent=1 // pred_fallthru
      _
    %2023 = vsyncpa [#allocation4], 1
    %2024 = vsyncpa [#allocation6], 1

</llo_original>
